<compile_context>
chip_gen: v6e
topology: v6e:2x2x1
jax: 0.10.0
libtpu: 0.0.40
codegen_flags: <defaults>
</compile_context>

<pallas_src>
import jax
import jax.numpy as jnp
from jax.experimental import pallas as pl
from jax.experimental.pallas import tpu as pltpu

NEG_SLOPE = 0.01            # nn.LeakyReLU default
BN_EPS = 1e-5               # nn.BatchNorm1d default
LANE = 128                  # keep output channel axis 128-dense
VMEM_LIMIT = 32 * 1024 * 1024
ROW_TILE_TARGET = 512       # >=512 rows per grid step keeps HBM BW utilization high


def _lrelu(x):
    return jnp.where(x >= 0, x, NEG_SLOPE * x)


def _round_up(n, m):
    return (n + m - 1) // m * m


def _pick_tile(n, target=ROW_TILE_TARGET):
    """Largest row tile <= target that divides n (multiple of 8 when tiling)."""
    if n <= target:
        return n
    for t in range(target, 7, -1):
        if n % t == 0 and t % 8 == 0:
            return t
    return n


def _pad_last(a, width):
    pad = width - a.shape[-1]
    if pad == 0:
        return a
    cfg = [(0, 0)] * (a.ndim - 1) + [(0, pad)]
    return jnp.pad(a, cfg)


# ---------------------------------------------------------------------------
# Pallas kernels
# ---------------------------------------------------------------------------
def stage1_kernel(x_ref, w_ref, b_ref, h1_ref, stats_ref):
    """conv1 as 3 shifted matmuls + LeakyReLU, plus BN1 stats accumulation.

    x_ref:     (L1+2, Cin)  even time samples of x for this batch, zero halo rows
    w_ref:     (3, Cin, Cp) bf16 per-tap weights
    b_ref:     (1, Cp)      bias
    h1_ref:    (T1, Cp)     pre-BN activation row tile (output)
    stats_ref: (2, Cp)      per-batch [sum; sum of squares] accumulator (output)
    """
    i = pl.program_id(1)
    T = h1_ref.shape[0]
    Cp = h1_ref.shape[1]

    acc = jnp.zeros((T, Cp), jnp.float32)
    for k in range(3):                                   # static unroll: 3 taps
        xk = x_ref[pl.ds(i * T + k, T), :].astype(jnp.bfloat16)
        acc = acc + jnp.dot(xk, w_ref[k], preferred_element_type=jnp.float32)
    h = _lrelu(acc + b_ref[...])
    h1_ref[...] = h

    @pl.when(i == 0)
    def _init():
        stats_ref[...] = jnp.zeros_like(stats_ref)

    stats_ref[0:1, :] += jnp.sum(h, axis=0, keepdims=True)
    stats_ref[1:2, :] += jnp.sum(h * h, axis=0, keepdims=True)


def stage2_kernel(h1_ref, w_ref, b_ref, scale1_ref, shift1_ref, h2_ref, stats_ref):
    """BN1 affine + conv2 (3 shifted matmuls) + LeakyReLU + BN2 stats.

    conv2 (k=3, s=2, d=2, p=2) only touches even rows of BN1(h1); over that
    subsequence it is a plain dilation-1 k=3 conv with one zero row of padding
    on each side (built here as shifted copies with an explicit zero row).

    h1_ref: (L1, Cp)  w_ref: (3, Cp, Cp) bf16  h2_ref: (L2, Cp)  stats: (2, Cp)
    """
    L2 = h2_ref.shape[0]
    Cp = h2_ref.shape[1]

    he = h1_ref[pl.ds(0, L2, stride=2), :]               # even rows of h1
    zn = he * scale1_ref[...] + shift1_ref[...]          # BN1 affine (f32)

    zrow = jnp.zeros((1, Cp), zn.dtype)                  # conv2's zero padding
    z_prev = jnp.concatenate([zrow, zn[:L2 - 1, :]], axis=0)   # tap k=0 (t-1)
    z_next = jnp.concatenate([zn[1:, :], zrow], axis=0)        # tap k=2 (t+1)

    acc = jnp.dot(z_prev.astype(jnp.bfloat16), w_ref[0],
                  preferred_element_type=jnp.float32)
    acc = acc + jnp.dot(zn.astype(jnp.bfloat16), w_ref[1],
                        preferred_element_type=jnp.float32)
    acc = acc + jnp.dot(z_next.astype(jnp.bfloat16), w_ref[2],
                        preferred_element_type=jnp.float32)
    h = _lrelu(acc + b_ref[...])

    h2_ref[...] = h
    stats_ref[0:1, :] = jnp.sum(h, axis=0, keepdims=True)
    stats_ref[1:2, :] = jnp.sum(h * h, axis=0, keepdims=True)


def stage3_kernel(h2_ref, xq_ref, wd_ref, bd_ref, scale2_ref, shift2_ref, out_ref):
    """BN2 affine + fused 1x1/stride-4 downsample residual + final LeakyReLU."""
    res = jnp.dot(xq_ref[...].astype(jnp.bfloat16), wd_ref[...],
                  preferred_element_type=jnp.float32) + bd_ref[...]
    y = h2_ref[...] * scale2_ref[...] + shift2_ref[...] + res
    out_ref[...] = _lrelu(y)


# ---------------------------------------------------------------------------
# Parameters
# ---------------------------------------------------------------------------
def init_params(key, n_inputs, n_outputs, kernel_size=3):
    ks = jax.random.split(key, 12)

    def weight_norm(v, g):  # nn.utils.weight_norm, dim=0 (per output channel)
        norm = jnp.sqrt(jnp.sum(v * v, axis=(1, 2), keepdims=True))
        return g * v / norm

    v1 = 0.3 * jax.random.normal(ks[0], (n_outputs, n_inputs, kernel_size), jnp.float32)
    g1 = 1.0 + 0.1 * jax.random.normal(ks[1], (n_outputs, 1, 1), jnp.float32)
    v2 = 0.3 * jax.random.normal(ks[5], (n_outputs, n_outputs, kernel_size), jnp.float32)
    g2 = 1.0 + 0.1 * jax.random.normal(ks[6], (n_outputs, 1, 1), jnp.float32)
    return dict(
        W1=weight_norm(v1, g1),
        b1=0.1 * jax.random.normal(ks[2], (n_outputs,), jnp.float32),
        gamma1=1.0 + 0.1 * jax.random.normal(ks[3], (n_outputs,), jnp.float32),
        beta1=0.1 * jax.random.normal(ks[4], (n_outputs,), jnp.float32),
        W2=weight_norm(v2, g2),
        b2=0.1 * jax.random.normal(ks[7], (n_outputs,), jnp.float32),
        gamma2=1.0 + 0.1 * jax.random.normal(ks[8], (n_outputs,), jnp.float32),
        beta2=0.1 * jax.random.normal(ks[9], (n_outputs,), jnp.float32),
        Wd=0.3 * jax.random.normal(ks[10], (n_outputs, n_inputs, 1), jnp.float32),
        bd=0.1 * jax.random.normal(ks[11], (n_outputs,), jnp.float32),
    )


# ---------------------------------------------------------------------------
# Forward pass
# ---------------------------------------------------------------------------
@jax.jit
def dblock_forward(x, p):
    """x: (B, Cin, L) NCL  ->  (B, Cout, L_out) NCL."""
    B, Cin, L = x.shape
    Cout = p["W1"].shape[0]
    K = p["W1"].shape[2]
    assert K == 3
    Cp = _round_up(Cout, LANE)

    L1 = (L - 1) // 2 + 1           # conv1 output length (= ceil(L/2))
    L2 = (L1 - 1) // 2 + 1          # conv2 output length
    Lds = (L - 1) // 4 + 1          # downsample Conv1d(k=1, stride=4) length
    assert Lds == L2, "main path / residual length mismatch"

    f32 = jnp.float32
    xt = jnp.transpose(x, (0, 2, 1)).astype(f32)        # (B, L, Cin) channels-last
    xe = xt[:, 0::2, :]                                 # conv taps only hit even samples
    xep = jnp.pad(xe, ((0, 0), (1, 1), (0, 0)))         # one zero halo row each side
    xq = xt[:, 0::4, :]                                 # residual taps (1x1, stride 4)

    # Per-tap weight matrices; output-channel axis padded to 128-dense lanes;
    # kept bf16-resident for the MXU.
    w1 = _pad_last(jnp.transpose(p["W1"], (2, 1, 0)), Cp).astype(jnp.bfloat16)       # (3, Cin, Cp)
    w2 = _pad_last(jnp.transpose(p["W2"], (2, 1, 0)), Cp)                             # (3, Cout, Cp)
    w2 = jnp.pad(w2, ((0, 0), (0, Cp - Cout), (0, 0))).astype(jnp.bfloat16)           # (3, Cp, Cp)
    wd = _pad_last(p["Wd"].reshape(Cout, Cin).T, Cp).astype(jnp.bfloat16)             # (Cin, Cp)

    b1 = _pad_last(p["b1"].reshape(1, Cout), Cp)
    b2 = _pad_last(p["b2"].reshape(1, Cout), Cp)
    bd = _pad_last(p["bd"].reshape(1, Cout), Cp)
    g1 = _pad_last(p["gamma1"].reshape(1, Cout), Cp)
    g2 = _pad_last(p["gamma2"].reshape(1, Cout), Cp)
    be1 = _pad_last(p["beta1"].reshape(1, Cout), Cp)
    be2 = _pad_last(p["beta2"].reshape(1, Cout), Cp)

    # ---- stage 1: conv1 + LeakyReLU, BN1 stats accumulated across row tiles ----
    T1 = _pick_tile(L1)
    nT1 = L1 // T1
    bytes1 = xep.size * 4 + w1.size * 2 + b1.size * 4 + B * L1 * Cp * 4 + B * 2 * Cp * 4
    h1, stats1 = pl.pallas_call(
        stage1_kernel,
        grid=(B, nT1),
        in_specs=[
            pl.BlockSpec((None, L1 + 2, Cin), lambda b, i: (b, 0, 0)),  # fetched once per batch
            pl.BlockSpec((K, Cin, Cp), lambda b, i: (0, 0, 0)),
            pl.BlockSpec((1, Cp), lambda b, i: (0, 0)),
        ],
        out_specs=[
            pl.BlockSpec((None, T1, Cp), lambda b, i: (b, i, 0)),
            pl.BlockSpec((None, 2, Cp), lambda b, i: (b, 0, 0)),        # revisited across i
        ],
        out_shape=[
            jax.ShapeDtypeStruct((B, L1, Cp), f32),
            jax.ShapeDtypeStruct((B, 2, Cp), f32),
        ],
        compiler_params=pltpu.CompilerParams(
            dimension_semantics=("parallel", "arbitrary"),
            vmem_limit_bytes=VMEM_LIMIT),
        cost_estimate=pl.CostEstimate(
            flops=2 * B * L1 * K * Cin * Cp, transcendentals=0, bytes_accessed=bytes1),
    )(xep, w1, b1)

    # BN1: fold batch statistics into a per-channel scale/shift (applied in stage 2).
    inv_n1 = 1.0 / (B * L1)
    mean1 = jnp.sum(stats1[:, 0, :], axis=0) * inv_n1
    var1 = jnp.maximum(jnp.sum(stats1[:, 1, :], axis=0) * inv_n1 - mean1 * mean1, 0.0)
    scale1 = g1 * jax.lax.rsqrt(var1 + BN_EPS)[None, :]
    shift1 = be1 - mean1[None, :] * scale1

    # ---- stage 2: BN1 affine + conv2 + LeakyReLU, BN2 stats per batch ----
    bytes2 = (h1.size * 4 + w2.size * 2 + (b2.size + scale1.size + shift1.size) * 4
              + B * L2 * Cp * 4 + B * 2 * Cp * 4)
    h2, stats2 = pl.pallas_call(
        stage2_kernel,
        grid=(B,),
        in_specs=[
            pl.BlockSpec((None, L1, Cp), lambda b: (b, 0, 0)),
            pl.BlockSpec((K, Cp, Cp), lambda b: (0, 0, 0)),
            pl.BlockSpec((1, Cp), lambda b: (0, 0)),
            pl.BlockSpec((1, Cp), lambda b: (0, 0)),
            pl.BlockSpec((1, Cp), lambda b: (0, 0)),
        ],
        out_specs=[
            pl.BlockSpec((None, L2, Cp), lambda b: (b, 0, 0)),
            pl.BlockSpec((None, 2, Cp), lambda b: (b, 0, 0)),
        ],
        out_shape=[
            jax.ShapeDtypeStruct((B, L2, Cp), f32),
            jax.ShapeDtypeStruct((B, 2, Cp), f32),
        ],
        compiler_params=pltpu.CompilerParams(
            dimension_semantics=("parallel",),
            vmem_limit_bytes=VMEM_LIMIT),
        cost_estimate=pl.CostEstimate(
            flops=2 * B * L2 * K * Cp * Cp, transcendentals=0, bytes_accessed=bytes2),
    )(h1, w2, b2, scale1, shift1)

    inv_n2 = 1.0 / (B * L2)
    mean2 = jnp.sum(stats2[:, 0, :], axis=0) * inv_n2
    var2 = jnp.maximum(jnp.sum(stats2[:, 1, :], axis=0) * inv_n2 - mean2 * mean2, 0.0)
    scale2 = g2 * jax.lax.rsqrt(var2 + BN_EPS)[None, :]
    shift2 = be2 - mean2[None, :] * scale2

    # ---- stage 3: BN2 affine + downsample residual + final LeakyReLU ----
    T3 = _pick_tile(L2)
    nT3 = L2 // T3
    bytes3 = h2.size * 4 + xq.size * 4 + wd.size * 2 + B * L2 * Cp * 4
    y = pl.pallas_call(
        stage3_kernel,
        grid=(B, nT3),
        in_specs=[
            pl.BlockSpec((None, T3, Cp), lambda b, i: (b, i, 0)),
            pl.BlockSpec((None, T3, Cin), lambda b, i: (b, i, 0)),
            pl.BlockSpec((Cin, Cp), lambda b, i: (0, 0)),
            pl.BlockSpec((1, Cp), lambda b, i: (0, 0)),
            pl.BlockSpec((1, Cp), lambda b, i: (0, 0)),
            pl.BlockSpec((1, Cp), lambda b, i: (0, 0)),
        ],
        out_specs=pl.BlockSpec((None, T3, Cp), lambda b, i: (b, i, 0)),
        out_shape=jax.ShapeDtypeStruct((B, L2, Cp), f32),
        compiler_params=pltpu.CompilerParams(
            dimension_semantics=("parallel", "parallel"),
            vmem_limit_bytes=VMEM_LIMIT),
        cost_estimate=pl.CostEstimate(
            flops=2 * B * L2 * Cin * Cp, transcendentals=0, bytes_accessed=bytes3),
    )(h2, xq, wd, bd, scale2, shift2)

    return jnp.transpose(y[:, :, :Cout], (0, 2, 1))      # back to (B, Cout, L2)


# ---------------------------------------------------------------------------
# Pure-JAX reference (for correctness check)
# ---------------------------------------------------------------------------
def dblock_reference(x, p):
    def conv1d(x, w, b, stride, dilation, padding):
        out = jax.lax.conv_general_dilated(
            x, w, window_strides=(stride,), padding=[(padding, padding)],
            rhs_dilation=(dilation,), dimension_numbers=("NCH", "OIH", "NCH"))
        return out + b[None, :, None]

    def bn(h, gamma, beta):
        mean = jnp.mean(h, axis=(0, 2), keepdims=True)
        var = jnp.mean(jnp.square(h - mean), axis=(0, 2), keepdims=True)
        return (h - mean) / jnp.sqrt(var + BN_EPS) * gamma[None, :, None] + beta[None, :, None]

    h = bn(_lrelu(conv1d(x, p["W1"], p["b1"], 2, 2, 2)), p["gamma1"], p["beta1"])
    h = bn(_lrelu(conv1d(h, p["W2"], p["b2"], 2, 2, 2)), p["gamma2"], p["beta2"])
    res = conv1d(x, p["Wd"], p["bd"], 4, 1, 0)
    return _lrelu(h + res)


if __name__ == "__main__":
    key = jax.random.PRNGKey(0)
    k_x, k_p = jax.random.split(key)
    B, Cin, Cout, L = 2, 4, 8, 16          # (Batch, input_channel, seq_len)
    x = jax.random.normal(k_x, (B, Cin, L), dtype=jnp.float32)
    params = init_params(k_p, Cin, Cout)

    y = jax.block_until_ready(dblock_forward(x, params))
    y_ref = dblock_reference(x, params)

    assert y.shape == (B, Cout, 4), y.shape
    max_err = float(jnp.max(jnp.abs(y - y_ref)))
    # bf16 MXU operands (f32 accumulation / f32 elementwise) -> loosened tolerance
    assert max_err < 5e-2, f"max abs error vs reference: {max_err}"

    print("KERNEL_OK")
</pallas_src>

<mosaic_0001>
module attributes {stable_mosaic.version = 11 : i64} {
  func.func @stage1_kernel(%arg0: i32, %arg1: i32, %arg2: memref<1x10x4xf32, #tpu.memory_space<vmem>>, %arg3: memref<3x4x128xbf16, #tpu.memory_space<vmem>>, %arg4: memref<1x128xf32, #tpu.memory_space<vmem>>, %arg5: memref<1x8x128xf32, #tpu.memory_space<vmem>>, %arg6: memref<1x2x128xf32, #tpu.memory_space<vmem>>) attributes {dimension_semantics = [#tpu.dimension_semantics<parallel>, #tpu.dimension_semantics<arbitrary>], iteration_bounds = array<i64: 2, 1>, scalar_prefetch = 0 : i64, scratch_operands = 0 : i64, tpu.core_type = #tpu.core_type<tc>, window_params = [{transform_indices = @transform_0, window_bounds = array<i64: 1, 10, 4>}, {pipeline_mode = #tpu.pipeline_mode<synchronous>, transform_indices = @transform_1, window_bounds = array<i64: 3, 4, 128>}, {pipeline_mode = #tpu.pipeline_mode<synchronous>, transform_indices = @transform_2, window_bounds = array<i64: 1, 128>}, {transform_indices = @transform_3, window_bounds = array<i64: 1, 8, 128>}, {transform_indices = @transform_4, window_bounds = array<i64: 1, 2, 128>}]} {
    %cst = arith.constant 0.000000e+00 : f32
    %0 = vector.broadcast %cst : f32 to vector<8x128xf32>
    %c8_i32 = arith.constant 8 : i32
    %1 = arith.muli %arg1, %c8_i32 : i32
    %c0_i32 = arith.constant 0 : i32
    %2 = arith.addi %1, %c0_i32 : i32
    %c0 = arith.constant 0 : index
    %3 = arith.index_cast %2 : i32 to index
    %c0_0 = arith.constant 0 : index
    %4 = vector.load %arg2[%c0, %3, %c0_0] : memref<1x10x4xf32, #tpu.memory_space<vmem>>, vector<1x8x4xf32>
    %5 = vector.shape_cast %4 : vector<1x8x4xf32> to vector<8x4xf32>
    %6 = arith.truncf %5 : vector<8x4xf32> to vector<8x4xbf16>
    %c0_1 = arith.constant 0 : index
    %c0_2 = arith.constant 0 : index
    %c0_3 = arith.constant 0 : index
    %7 = vector.load %arg3[%c0_1, %c0_2, %c0_3] : memref<3x4x128xbf16, #tpu.memory_space<vmem>>, vector<1x4x128xbf16>
    %8 = vector.shape_cast %7 : vector<1x4x128xbf16> to vector<4x128xbf16>
    %cst_4 = arith.constant dense<0.000000e+00> : vector<8x128xf32>
    %9 = tpu.matmul %6, %8, %cst_4 {dimension_numbers = #tpu.dot_dimension_numbers<[1], [0], [0], [1], [0, 0, 1, 1], [], []>} : vector<8x4xbf16>, vector<4x128xbf16>, vector<8x128xf32> -> vector<8x128xf32>
    %10 = arith.addf %0, %9 : vector<8x128xf32>
    %c8_i32_5 = arith.constant 8 : i32
    %11 = arith.muli %arg1, %c8_i32_5 : i32
    %c1_i32 = arith.constant 1 : i32
    %12 = arith.addi %11, %c1_i32 : i32
    %c0_6 = arith.constant 0 : index
    %13 = arith.index_cast %12 : i32 to index
    %c0_7 = arith.constant 0 : index
    %14 = vector.load %arg2[%c0_6, %13, %c0_7] : memref<1x10x4xf32, #tpu.memory_space<vmem>>, vector<1x8x4xf32>
    %15 = vector.shape_cast %14 : vector<1x8x4xf32> to vector<8x4xf32>
    %16 = arith.truncf %15 : vector<8x4xf32> to vector<8x4xbf16>
    %c1 = arith.constant 1 : index
    %c0_8 = arith.constant 0 : index
    %c0_9 = arith.constant 0 : index
    %17 = vector.load %arg3[%c1, %c0_8, %c0_9] : memref<3x4x128xbf16, #tpu.memory_space<vmem>>, vector<1x4x128xbf16>
    %18 = vector.shape_cast %17 : vector<1x4x128xbf16> to vector<4x128xbf16>
    %cst_10 = arith.constant dense<0.000000e+00> : vector<8x128xf32>
    %19 = tpu.matmul %16, %18, %cst_10 {dimension_numbers = #tpu.dot_dimension_numbers<[1], [0], [0], [1], [0, 0, 1, 1], [], []>} : vector<8x4xbf16>, vector<4x128xbf16>, vector<8x128xf32> -> vector<8x128xf32>
    %20 = arith.addf %10, %19 : vector<8x128xf32>
    %c8_i32_11 = arith.constant 8 : i32
    %21 = arith.muli %arg1, %c8_i32_11 : i32
    %c2_i32 = arith.constant 2 : i32
    %22 = arith.addi %21, %c2_i32 : i32
    %c0_12 = arith.constant 0 : index
    %23 = arith.index_cast %22 : i32 to index
    %c0_13 = arith.constant 0 : index
    %24 = vector.load %arg2[%c0_12, %23, %c0_13] : memref<1x10x4xf32, #tpu.memory_space<vmem>>, vector<1x8x4xf32>
    %25 = vector.shape_cast %24 : vector<1x8x4xf32> to vector<8x4xf32>
    %26 = arith.truncf %25 : vector<8x4xf32> to vector<8x4xbf16>
    %c2 = arith.constant 2 : index
    %c0_14 = arith.constant 0 : index
    %c0_15 = arith.constant 0 : index
    %27 = vector.load %arg3[%c2, %c0_14, %c0_15] : memref<3x4x128xbf16, #tpu.memory_space<vmem>>, vector<1x4x128xbf16>
    %28 = vector.shape_cast %27 : vector<1x4x128xbf16> to vector<4x128xbf16>
    %cst_16 = arith.constant dense<0.000000e+00> : vector<8x128xf32>
    %29 = tpu.matmul %26, %28, %cst_16 {dimension_numbers = #tpu.dot_dimension_numbers<[1], [0], [0], [1], [0, 0, 1, 1], [], []>} : vector<8x4xbf16>, vector<4x128xbf16>, vector<8x128xf32> -> vector<8x128xf32>
    %30 = arith.addf %20, %29 : vector<8x128xf32>
    %c0_17 = arith.constant 0 : index
    %c0_18 = arith.constant 0 : index
    %31 = vector.load %arg4[%c0_17, %c0_18] : memref<1x128xf32, #tpu.memory_space<vmem>>, vector<1x128xf32>
    %32 = vector.broadcast %31 : vector<1x128xf32> to vector<8x128xf32>
    %33 = arith.addf %30, %32 : vector<8x128xf32>
    %cst_19 = arith.constant 0.000000e+00 : f32
    %34 = vector.broadcast %cst_19 : f32 to vector<8x128xf32>
    %35 = arith.cmpf oge, %33, %34 : vector<8x128xf32>
    %cst_20 = arith.constant 0.00999999977 : f32
    %36 = vector.broadcast %cst_20 : f32 to vector<8x128xf32>
    %37 = arith.mulf %36, %33 : vector<8x128xf32>
    %38 = arith.select %35, %33, %37 : vector<8x128xi1>, vector<8x128xf32>
    %c0_21 = arith.constant 0 : index
    %c0_22 = arith.constant 0 : index
    %c0_23 = arith.constant 0 : index
    %39 = vector.load %arg5[%c0_21, %c0_22, %c0_23] : memref<1x8x128xf32, #tpu.memory_space<vmem>>, vector<1x8x128xf32>
    %40 = vector.shape_cast %39 : vector<1x8x128xf32> to vector<8x128xf32>
    %41 = vector.shape_cast %38 : vector<8x128xf32> to vector<1x8x128xf32>
    tpu.vector_store %arg5[%c0_21, %c0_22, %c0_23], %41 {strides = array<i32>} : memref<1x8x128xf32, #tpu.memory_space<vmem>>, vector<1x8x128xf32>,
    %c0_i32_24 = arith.constant 0 : i32
    %42 = arith.cmpi eq, %arg1, %c0_i32_24 : i32
    %43 = arith.extui %42 : i1 to i32
    %c0_i32_25 = arith.constant 0 : i32
    %44 = arith.cmpi ne, %43, %c0_i32_25 : i32
    scf.if %44 {
      %cst_40 = arith.constant 0.000000e+00 : f32
      %62 = vector.broadcast %cst_40 : f32 to vector<2x128xf32>
      %c0_41 = arith.constant 0 : index
      %c0_42 = arith.constant 0 : index
      %c0_43 = arith.constant 0 : index
      %63 = vector.load %arg6[%c0_41, %c0_42, %c0_43] : memref<1x2x128xf32, #tpu.memory_space<vmem>>, vector<1x2x128xf32>
      %64 = vector.shape_cast %63 : vector<1x2x128xf32> to vector<2x128xf32>
      %65 = vector.shape_cast %62 : vector<2x128xf32> to vector<1x2x128xf32>
      tpu.vector_store %arg6[%c0_41, %c0_42, %c0_43], %65 {strides = array<i32>} : memref<1x2x128xf32, #tpu.memory_space<vmem>>, vector<1x2x128xf32>,
    } else {
    }
    %c0_26 = arith.constant 0 : index
    %c0_27 = arith.constant 0 : index
    %c0_28 = arith.constant 0 : index
    %45 = vector.load %arg6[%c0_26, %c0_27, %c0_28] : memref<1x2x128xf32, #tpu.memory_space<vmem>>, vector<1x1x128xf32>
    %46 = vector.shape_cast %45 : vector<1x1x128xf32> to vector<1x128xf32>
    %cst_29 = arith.constant dense<0.000000e+00> : vector<128xf32>
    %47 = vector.multi_reduction <add>, %38, %cst_29 [0] : vector<8x128xf32> to vector<128xf32>
    %48 = vector.shape_cast %47 : vector<128xf32> to vector<1x128xf32>
    %49 = arith.addf %46, %48 : vector<1x128xf32>
    %c0_30 = arith.constant 0 : index
    %c0_31 = arith.constant 0 : index
    %c0_32 = arith.constant 0 : index
    %50 = vector.load %arg6[%c0_30, %c0_31, %c0_32] : memref<1x2x128xf32, #tpu.memory_space<vmem>>, vector<1x1x128xf32>
    %51 = vector.shape_cast %50 : vector<1x1x128xf32> to vector<1x128xf32>
    %52 = vector.shape_cast %49 : vector<1x128xf32> to vector<1x1x128xf32>
    tpu.vector_store %arg6[%c0_30, %c0_31, %c0_32], %52 {strides = array<i32>} : memref<1x2x128xf32, #tpu.memory_space<vmem>>, vector<1x1x128xf32>,
    %c0_33 = arith.constant 0 : index
    %c1_34 = arith.constant 1 : index
    %c0_35 = arith.constant 0 : index
    %53 = vector.load %arg6[%c0_33, %c1_34, %c0_35] : memref<1x2x128xf32, #tpu.memory_space<vmem>>, vector<1x1x128xf32>
    %54 = vector.shape_cast %53 : vector<1x1x128xf32> to vector<1x128xf32>
    %55 = arith.mulf %38, %38 : vector<8x128xf32>
    %cst_36 = arith.constant dense<0.000000e+00> : vector<128xf32>
    %56 = vector.multi_reduction <add>, %55, %cst_36 [0] : vector<8x128xf32> to vector<128xf32>
    %57 = vector.shape_cast %56 : vector<128xf32> to vector<1x128xf32>
    %58 = arith.addf %54, %57 : vector<1x128xf32>
    %c0_37 = arith.constant 0 : index
    %c1_38 = arith.constant 1 : index
    %c0_39 = arith.constant 0 : index
    %59 = vector.load %arg6[%c0_37, %c1_38, %c0_39] : memref<1x2x128xf32, #tpu.memory_space<vmem>>, vector<1x1x128xf32>
    %60 = vector.shape_cast %59 : vector<1x1x128xf32> to vector<1x128xf32>
    %61 = vector.shape_cast %58 : vector<1x128xf32> to vector<1x1x128xf32>
    tpu.vector_store %arg6[%c0_37, %c1_38, %c0_39], %61 {strides = array<i32>} : memref<1x2x128xf32, #tpu.memory_space<vmem>>, vector<1x1x128xf32>,
    return
  }
  func.func @transform_0(%arg0: i32, %arg1: i32) -> (i32, i32, i32) {
    %c0_i32 = arith.constant 0 : i32
    %c0_i32_0 = arith.constant 0 : i32
    %c0_i32_1 = arith.constant 0 : i32
    return %arg0, %c0_i32, %c0_i32_0 : i32, i32, i32
  }
  func.func @transform_1(%arg0: i32, %arg1: i32) -> (i32, i32, i32) {
    %c0_i32 = arith.constant 0 : i32
    %c0_i32_0 = arith.constant 0 : i32
    %c0_i32_1 = arith.constant 0 : i32
    %c0_i32_2 = arith.constant 0 : i32
    return %c0_i32, %c0_i32_0, %c0_i32_1 : i32, i32, i32
  }
  func.func @transform_2(%arg0: i32, %arg1: i32) -> (i32, i32) {
    %c0_i32 = arith.constant 0 : i32
    %c0_i32_0 = arith.constant 0 : i32
    %c0_i32_1 = arith.constant 0 : i32
    return %c0_i32, %c0_i32_0 : i32, i32
  }
  func.func @transform_3(%arg0: i32, %arg1: i32) -> (i32, i32, i32) {
    %c0_i32 = arith.constant 0 : i32
    %c0_i32_0 = arith.constant 0 : i32
    return %arg0, %arg1, %c0_i32 : i32, i32, i32
  }
  func.func @transform_4(%arg0: i32, %arg1: i32) -> (i32, i32, i32) {
    %c0_i32 = arith.constant 0 : i32
    %c0_i32_0 = arith.constant 0 : i32
    %c0_i32_1 = arith.constant 0 : i32
    return %arg0, %c0_i32, %c0_i32_0 : i32, i32, i32
  }
}

module attributes {stable_mosaic.version = 11 : i64} {
  func.func @stage2_kernel(%arg0: i32, %arg1: memref<1x8x128xf32, #tpu.memory_space<vmem>>, %arg2: memref<3x128x128xbf16, #tpu.memory_space<vmem>>, %arg3: memref<1x128xf32, #tpu.memory_space<vmem>>, %arg4: memref<1x128xf32, #tpu.memory_space<vmem>>, %arg5: memref<1x128xf32, #tpu.memory_space<vmem>>, %arg6: memref<1x4x128xf32, #tpu.memory_space<vmem>>, %arg7: memref<1x2x128xf32, #tpu.memory_space<vmem>>) attributes {dimension_semantics = [#tpu.dimension_semantics<parallel>], iteration_bounds = array<i64: 2>, scalar_prefetch = 0 : i64, scratch_operands = 0 : i64, tpu.core_type = #tpu.core_type<tc>, window_params = [{transform_indices = @transform_0, window_bounds = array<i64: 1, 8, 128>}, {pipeline_mode = #tpu.pipeline_mode<synchronous>, transform_indices = @transform_1, window_bounds = array<i64: 3, 128, 128>}, {pipeline_mode = #tpu.pipeline_mode<synchronous>, transform_indices = @transform_2, window_bounds = array<i64: 1, 128>}, {pipeline_mode = #tpu.pipeline_mode<synchronous>, transform_indices = @transform_3, window_bounds = array<i64: 1, 128>}, {pipeline_mode = #tpu.pipeline_mode<synchronous>, transform_indices = @transform_4, window_bounds = array<i64: 1, 128>}, {transform_indices = @transform_5, window_bounds = array<i64: 1, 4, 128>}, {transform_indices = @transform_6, window_bounds = array<i64: 1, 2, 128>}]} {
    %c0 = arith.constant 0 : index
    %c0_0 = arith.constant 0 : index
    %c0_1 = arith.constant 0 : index
    %0 = tpu.strided_load %arg1[%c0, %c0_0, %c0_1] {strides = array<i32: 1, 2, 1>} : memref<1x8x128xf32, #tpu.memory_space<vmem>>, vector<1x4x128xf32>
    %1 = vector.shape_cast %0 : vector<1x4x128xf32> to vector<4x128xf32>
    %c0_2 = arith.constant 0 : index
    %c0_3 = arith.constant 0 : index
    %2 = vector.load %arg4[%c0_2, %c0_3] : memref<1x128xf32, #tpu.memory_space<vmem>>, vector<1x128xf32>
    %3 = vector.broadcast %2 : vector<1x128xf32> to vector<4x128xf32>
    %4 = arith.mulf %1, %3 : vector<4x128xf32>
    %c0_4 = arith.constant 0 : index
    %c0_5 = arith.constant 0 : index
    %5 = vector.load %arg5[%c0_4, %c0_5] : memref<1x128xf32, #tpu.memory_space<vmem>>, vector<1x128xf32>
    %6 = vector.broadcast %5 : vector<1x128xf32> to vector<4x128xf32>
    %7 = arith.addf %4, %6 : vector<4x128xf32>
    %cst = arith.constant 0.000000e+00 : f32
    %8 = vector.broadcast %cst : f32 to vector<1x128xf32>
    %9 = vector.extract_strided_slice %7 {offsets = [0, 0], sizes = [3, 128], strides = [1, 1]} : vector<4x128xf32> to vector<3x128xf32>
    %10 = tpu.concatenate %8, %9 in 0 : vector<1x128xf32>, vector<3x128xf32> -> vector<4x128xf32>
    %11 = vector.extract_strided_slice %7 {offsets = [1, 0], sizes = [3, 128], strides = [1, 1]} : vector<4x128xf32> to vector<3x128xf32>
    %12 = tpu.concatenate %11, %8 in 0 : vector<3x128xf32>, vector<1x128xf32> -> vector<4x128xf32>
    %13 = arith.truncf %10 : vector<4x128xf32> to vector<4x128xbf16>
    %c0_6 = arith.constant 0 : index
    %c0_7 = arith.constant 0 : index
    %c0_8 = arith.constant 0 : index
    %14 = vector.load %arg2[%c0_6, %c0_7, %c0_8] : memref<3x128x128xbf16, #tpu.memory_space<vmem>>, vector<1x128x128xbf16>
    %15 = vector.shape_cast %14 : vector<1x128x128xbf16> to vector<128x128xbf16>
    %cst_9 = arith.constant dense<0.000000e+00> : vector<4x128xf32>
    %16 = tpu.matmul %13, %15, %cst_9 {dimension_numbers = #tpu.dot_dimension_numbers<[1], [0], [0], [1], [0, 0, 1, 1], [], []>} : vector<4x128xbf16>, vector<128x128xbf16>, vector<4x128xf32> -> vector<4x128xf32>
    %17 = arith.truncf %7 : vector<4x128xf32> to vector<4x128xbf16>
    %c1 = arith.constant 1 : index
    %c0_10 = arith.constant 0 : index
    %c0_11 = arith.constant 0 : index
    %18 = vector.load %arg2[%c1, %c0_10, %c0_11] : memref<3x128x128xbf16, #tpu.memory_space<vmem>>, vector<1x128x128xbf16>
    %19 = vector.shape_cast %18 : vector<1x128x128xbf16> to vector<128x128xbf16>
    %cst_12 = arith.constant dense<0.000000e+00> : vector<4x128xf32>
    %20 = tpu.matmul %17, %19, %cst_12 {dimension_numbers = #tpu.dot_dimension_numbers<[1], [0], [0], [1], [0, 0, 1, 1], [], []>} : vector<4x128xbf16>, vector<128x128xbf16>, vector<4x128xf32> -> vector<4x128xf32>
    %21 = arith.addf %16, %20 : vector<4x128xf32>
    %22 = arith.truncf %12 : vector<4x128xf32> to vector<4x128xbf16>
    %c2 = arith.constant 2 : index
    %c0_13 = arith.constant 0 : index
    %c0_14 = arith.constant 0 : index
    %23 = vector.load %arg2[%c2, %c0_13, %c0_14] : memref<3x128x128xbf16, #tpu.memory_space<vmem>>, vector<1x128x128xbf16>
    %24 = vector.shape_cast %23 : vector<1x128x128xbf16> to vector<128x128xbf16>
    %cst_15 = arith.constant dense<0.000000e+00> : vector<4x128xf32>
    %25 = tpu.matmul %22, %24, %cst_15 {dimension_numbers = #tpu.dot_dimension_numbers<[1], [0], [0], [1], [0, 0, 1, 1], [], []>} : vector<4x128xbf16>, vector<128x128xbf16>, vector<4x128xf32> -> vector<4x128xf32>
    %26 = arith.addf %21, %25 : vector<4x128xf32>
    %c0_16 = arith.constant 0 : index
    %c0_17 = arith.constant 0 : index
    %27 = vector.load %arg3[%c0_16, %c0_17] : memref<1x128xf32, #tpu.memory_space<vmem>>, vector<1x128xf32>
    %28 = vector.broadcast %27 : vector<1x128xf32> to vector<4x128xf32>
    %29 = arith.addf %26, %28 : vector<4x128xf32>
    %cst_18 = arith.constant 0.000000e+00 : f32
    %30 = vector.broadcast %cst_18 : f32 to vector<4x128xf32>
    %31 = arith.cmpf oge, %29, %30 : vector<4x128xf32>
    %cst_19 = arith.constant 0.00999999977 : f32
    %32 = vector.broadcast %cst_19 : f32 to vector<4x128xf32>
    %33 = arith.mulf %32, %29 : vector<4x128xf32>
    %34 = arith.select %31, %29, %33 : vector<4x128xi1>, vector<4x128xf32>
    %c0_20 = arith.constant 0 : index
    %c0_21 = arith.constant 0 : index
    %c0_22 = arith.constant 0 : index
    %35 = vector.load %arg6[%c0_20, %c0_21, %c0_22] : memref<1x4x128xf32, #tpu.memory_space<vmem>>, vector<1x4x128xf32>
    %36 = vector.shape_cast %35 : vector<1x4x128xf32> to vector<4x128xf32>
    %37 = vector.shape_cast %34 : vector<4x128xf32> to vector<1x4x128xf32>
    tpu.vector_store %arg6[%c0_20, %c0_21, %c0_22], %37 {strides = array<i32>} : memref<1x4x128xf32, #tpu.memory_space<vmem>>, vector<1x4x128xf32>,
    %cst_23 = arith.constant dense<0.000000e+00> : vector<128xf32>
    %38 = vector.multi_reduction <add>, %34, %cst_23 [0] : vector<4x128xf32> to vector<128xf32>
    %39 = vector.shape_cast %38 : vector<128xf32> to vector<1x128xf32>
    %c0_24 = arith.constant 0 : index
    %c0_25 = arith.constant 0 : index
    %c0_26 = arith.constant 0 : index
    %40 = vector.load %arg7[%c0_24, %c0_25, %c0_26] : memref<1x2x128xf32, #tpu.memory_space<vmem>>, vector<1x1x128xf32>
    %41 = vector.shape_cast %40 : vector<1x1x128xf32> to vector<1x128xf32>
    %42 = vector.shape_cast %39 : vector<1x128xf32> to vector<1x1x128xf32>
    tpu.vector_store %arg7[%c0_24, %c0_25, %c0_26], %42 {strides = array<i32>} : memref<1x2x128xf32, #tpu.memory_space<vmem>>, vector<1x1x128xf32>,
    %43 = arith.mulf %34, %34 : vector<4x128xf32>
    %cst_27 = arith.constant dense<0.000000e+00> : vector<128xf32>
    %44 = vector.multi_reduction <add>, %43, %cst_27 [0] : vector<4x128xf32> to vector<128xf32>
    %45 = vector.shape_cast %44 : vector<128xf32> to vector<1x128xf32>
    %c0_28 = arith.constant 0 : index
    %c1_29 = arith.constant 1 : index
    %c0_30 = arith.constant 0 : index
    %46 = vector.load %arg7[%c0_28, %c1_29, %c0_30] : memref<1x2x128xf32, #tpu.memory_space<vmem>>, vector<1x1x128xf32>
    %47 = vector.shape_cast %46 : vector<1x1x128xf32> to vector<1x128xf32>
    %48 = vector.shape_cast %45 : vector<1x128xf32> to vector<1x1x128xf32>
    tpu.vector_store %arg7[%c0_28, %c1_29, %c0_30], %48 {strides = array<i32>} : memref<1x2x128xf32, #tpu.memory_space<vmem>>, vector<1x1x128xf32>,
    return
  }
  func.func @transform_0(%arg0: i32) -> (i32, i32, i32) {
    %c0_i32 = arith.constant 0 : i32
    %c0_i32_0 = arith.constant 0 : i32
    %c0_i32_1 = arith.constant 0 : i32
    return %arg0, %c0_i32, %c0_i32_0 : i32, i32, i32
  }
  func.func @transform_1(%arg0: i32) -> (i32, i32, i32) {
    %c0_i32 = arith.constant 0 : i32
    %c0_i32_0 = arith.constant 0 : i32
    %c0_i32_1 = arith.constant 0 : i32
    %c0_i32_2 = arith.constant 0 : i32
    return %c0_i32, %c0_i32_0, %c0_i32_1 : i32, i32, i32
  }
  func.func @transform_2(%arg0: i32) -> (i32, i32) {
    %c0_i32 = arith.constant 0 : i32
    %c0_i32_0 = arith.constant 0 : i32
    %c0_i32_1 = arith.constant 0 : i32
    return %c0_i32, %c0_i32_0 : i32, i32
  }
  func.func @transform_3(%arg0: i32) -> (i32, i32) {
    %c0_i32 = arith.constant 0 : i32
    %c0_i32_0 = arith.constant 0 : i32
    %c0_i32_1 = arith.constant 0 : i32
    return %c0_i32, %c0_i32_0 : i32, i32
  }
  func.func @transform_4(%arg0: i32) -> (i32, i32) {
    %c0_i32 = arith.constant 0 : i32
    %c0_i32_0 = arith.constant 0 : i32
    %c0_i32_1 = arith.constant 0 : i32
    return %c0_i32, %c0_i32_0 : i32, i32
  }
  func.func @transform_5(%arg0: i32) -> (i32, i32, i32) {
    %c0_i32 = arith.constant 0 : i32
    %c0_i32_0 = arith.constant 0 : i32
    %c0_i32_1 = arith.constant 0 : i32
    return %arg0, %c0_i32, %c0_i32_0 : i32, i32, i32
  }
  func.func @transform_6(%arg0: i32) -> (i32, i32, i32) {
    %c0_i32 = arith.constant 0 : i32
    %c0_i32_0 = arith.constant 0 : i32
    %c0_i32_1 = arith.constant 0 : i32
    return %arg0, %c0_i32, %c0_i32_0 : i32, i32, i32
  }
}

module attributes {stable_mosaic.version = 11 : i64} {
  func.func @stage3_kernel(%arg0: i32, %arg1: i32, %arg2: memref<1x4x128xf32, #tpu.memory_space<vmem>>, %arg3: memref<1x4x4xf32, #tpu.memory_space<vmem>>, %arg4: memref<4x128xbf16, #tpu.memory_space<vmem>>, %arg5: memref<1x128xf32, #tpu.memory_space<vmem>>, %arg6: memref<1x128xf32, #tpu.memory_space<vmem>>, %arg7: memref<1x128xf32, #tpu.memory_space<vmem>>, %arg8: memref<1x4x128xf32, #tpu.memory_space<vmem>>) attributes {dimension_semantics = [#tpu.dimension_semantics<parallel>, #tpu.dimension_semantics<parallel>], iteration_bounds = array<i64: 2, 1>, scalar_prefetch = 0 : i64, scratch_operands = 0 : i64, tpu.core_type = #tpu.core_type<tc>, window_params = [{transform_indices = @transform_0, window_bounds = array<i64: 1, 4, 128>}, {transform_indices = @transform_1, window_bounds = array<i64: 1, 4, 4>}, {pipeline_mode = #tpu.pipeline_mode<synchronous>, transform_indices = @transform_2, window_bounds = array<i64: 4, 128>}, {pipeline_mode = #tpu.pipeline_mode<synchronous>, transform_indices = @transform_3, window_bounds = array<i64: 1, 128>}, {pipeline_mode = #tpu.pipeline_mode<synchronous>, transform_indices = @transform_4, window_bounds = array<i64: 1, 128>}, {pipeline_mode = #tpu.pipeline_mode<synchronous>, transform_indices = @transform_5, window_bounds = array<i64: 1, 128>}, {transform_indices = @transform_6, window_bounds = array<i64: 1, 4, 128>}]} {
    %c0 = arith.constant 0 : index
    %c0_0 = arith.constant 0 : index
    %c0_1 = arith.constant 0 : index
    %0 = vector.load %arg3[%c0, %c0_0, %c0_1] : memref<1x4x4xf32, #tpu.memory_space<vmem>>, vector<1x4x4xf32>
    %1 = vector.shape_cast %0 : vector<1x4x4xf32> to vector<4x4xf32>
    %2 = arith.truncf %1 : vector<4x4xf32> to vector<4x4xbf16>
    %c0_2 = arith.constant 0 : index
    %c0_3 = arith.constant 0 : index
    %3 = vector.load %arg4[%c0_2, %c0_3] : memref<4x128xbf16, #tpu.memory_space<vmem>>, vector<4x128xbf16>
    %cst = arith.constant dense<0.000000e+00> : vector<4x128xf32>
    %4 = tpu.matmul %2, %3, %cst {dimension_numbers = #tpu.dot_dimension_numbers<[1], [0], [0], [1], [0, 0, 1, 1], [], []>} : vector<4x4xbf16>, vector<4x128xbf16>, vector<4x128xf32> -> vector<4x128xf32>
    %c0_4 = arith.constant 0 : index
    %c0_5 = arith.constant 0 : index
    %5 = vector.load %arg5[%c0_4, %c0_5] : memref<1x128xf32, #tpu.memory_space<vmem>>, vector<1x128xf32>
    %6 = vector.broadcast %5 : vector<1x128xf32> to vector<4x128xf32>
    %7 = arith.addf %4, %6 : vector<4x128xf32>
    %c0_6 = arith.constant 0 : index
    %c0_7 = arith.constant 0 : index
    %c0_8 = arith.constant 0 : index
    %8 = vector.load %arg2[%c0_6, %c0_7, %c0_8] : memref<1x4x128xf32, #tpu.memory_space<vmem>>, vector<1x4x128xf32>
    %9 = vector.shape_cast %8 : vector<1x4x128xf32> to vector<4x128xf32>
    %c0_9 = arith.constant 0 : index
    %c0_10 = arith.constant 0 : index
    %10 = vector.load %arg6[%c0_9, %c0_10] : memref<1x128xf32, #tpu.memory_space<vmem>>, vector<1x128xf32>
    %11 = vector.broadcast %10 : vector<1x128xf32> to vector<4x128xf32>
    %12 = arith.mulf %9, %11 : vector<4x128xf32>
    %c0_11 = arith.constant 0 : index
    %c0_12 = arith.constant 0 : index
    %13 = vector.load %arg7[%c0_11, %c0_12] : memref<1x128xf32, #tpu.memory_space<vmem>>, vector<1x128xf32>
    %14 = vector.broadcast %13 : vector<1x128xf32> to vector<4x128xf32>
    %15 = arith.addf %12, %14 : vector<4x128xf32>
    %16 = arith.addf %15, %7 : vector<4x128xf32>
    %cst_13 = arith.constant 0.000000e+00 : f32
    %17 = vector.broadcast %cst_13 : f32 to vector<4x128xf32>
    %18 = arith.cmpf oge, %16, %17 : vector<4x128xf32>
    %cst_14 = arith.constant 0.00999999977 : f32
    %19 = vector.broadcast %cst_14 : f32 to vector<4x128xf32>
    %20 = arith.mulf %19, %16 : vector<4x128xf32>
    %21 = arith.select %18, %16, %20 : vector<4x128xi1>, vector<4x128xf32>
    %c0_15 = arith.constant 0 : index
    %c0_16 = arith.constant 0 : index
    %c0_17 = arith.constant 0 : index
    %22 = vector.load %arg8[%c0_15, %c0_16, %c0_17] : memref<1x4x128xf32, #tpu.memory_space<vmem>>, vector<1x4x128xf32>
    %23 = vector.shape_cast %22 : vector<1x4x128xf32> to vector<4x128xf32>
    %24 = vector.shape_cast %21 : vector<4x128xf32> to vector<1x4x128xf32>
    tpu.vector_store %arg8[%c0_15, %c0_16, %c0_17], %24 {strides = array<i32>} : memref<1x4x128xf32, #tpu.memory_space<vmem>>, vector<1x4x128xf32>,
    return
  }
  func.func @transform_0(%arg0: i32, %arg1: i32) -> (i32, i32, i32) {
    %c0_i32 = arith.constant 0 : i32
    %c0_i32_0 = arith.constant 0 : i32
    return %arg0, %arg1, %c0_i32 : i32, i32, i32
  }
  func.func @transform_1(%arg0: i32, %arg1: i32) -> (i32, i32, i32) {
    %c0_i32 = arith.constant 0 : i32
    %c0_i32_0 = arith.constant 0 : i32
    return %arg0, %arg1, %c0_i32 : i32, i32, i32
  }
  func.func @transform_2(%arg0: i32, %arg1: i32) -> (i32, i32) {
    %c0_i32 = arith.constant 0 : i32
    %c0_i32_0 = arith.constant 0 : i32
    %c0_i32_1 = arith.constant 0 : i32
    return %c0_i32, %c0_i32_0 : i32, i32
  }
  func.func @transform_3(%arg0: i32, %arg1: i32) -> (i32, i32) {
    %c0_i32 = arith.constant 0 : i32
    %c0_i32_0 = arith.constant 0 : i32
    %c0_i32_1 = arith.constant 0 : i32
    return %c0_i32, %c0_i32_0 : i32, i32
  }
  func.func @transform_4(%arg0: i32, %arg1: i32) -> (i32, i32) {
    %c0_i32 = arith.constant 0 : i32
    %c0_i32_0 = arith.constant 0 : i32
    %c0_i32_1 = arith.constant 0 : i32
    return %c0_i32, %c0_i32_0 : i32, i32
  }
  func.func @transform_5(%arg0: i32, %arg1: i32) -> (i32, i32) {
    %c0_i32 = arith.constant 0 : i32
    %c0_i32_0 = arith.constant 0 : i32
    %c0_i32_1 = arith.constant 0 : i32
    return %c0_i32, %c0_i32_0 : i32, i32
  }
  func.func @transform_6(%arg0: i32, %arg1: i32) -> (i32, i32, i32) {
    %c0_i32 = arith.constant 0 : i32
    %c0_i32_0 = arith.constant 0 : i32
    return %arg0, %arg1, %c0_i32 : i32, i32, i32
  }
}

</mosaic_0001>

<llo_original>
// kernel: dblock_forward.5
$region0: #{dblock_forward.5}
  #allocation0 [shape = 'u32[]', space=smem, size = 0x4, offset = 0x4, fixed_abs, tag = 'smem constant byte address 0x4 - core index']
  #allocation1 [shape = 'u32[144,128]{1,0:T(1,128)}', space=vmem, size = 0x12000, scoped, tag = 'internal scratch']
  %s0 = inlined_call_operand.vmem [shape: f32[2,4,128], index: 0, kind: input, shape index: {}]
  %s1 = inlined_call_operand.vmem [shape: f32[2,4,4], index: 1, kind: input, shape index: {}]
  %s2 = inlined_call_operand.vmem [shape: bf16[4,128], index: 2, kind: input, shape index: {}]
  %s3 = inlined_call_operand.vmem [shape: f32[1,128], index: 3, kind: input, shape index: {}]
  %s4 = inlined_call_operand.vmem [shape: f32[1,128], index: 4, kind: input, shape index: {}]
  %s5 = inlined_call_operand.vmem [shape: f32[1,128], index: 5, kind: input, shape index: {}]
  %s6 = inlined_call_operand.vmem [shape: f32[2,4,128], index: 6, kind: output, shape index: {}]
  %s7 = sld [smem:[#allocation0]]
  $region57: #{dblock_forward.5} parent=0
    _
  %s9 = ssub.s32 1, %s7
  %s10 = scalar_select 0, %s9, %s7
  loop: start=0, step=1, limit=4
  $region2: #{dblock_forward.5} parent=0 // loop_pre_header
    _
  $region3: #{dblock_forward.5} parent=0 // loop_header
    %s12 = sphi 0, %s16
    %p13 = scmp.ge.s32.totalorder %s12, 4
    %s19 = sphi 0, %s31
    %s20 = sphi 0, %s27
    %s21 = sphi 0, %s19
    %s22 = sphi 0, %s20
    %s23 = sphi 0, %s21
    %s24 = sphi 0, %s22
    %s36 = sphi 0, %s38
    %s39 = sphi 0, %s36
    %s40 = sphi 0, %s39
    %s56 = sphi 0, %s40
    %s64 = sphi 0, %s66
    %s67 = sphi 0, %s64
    %s68 = sphi 0, %s67
    %s84 = sphi 0, %s68
    %s88 = sphi 0, %s88
    %s90 = sphi 0, %s88
    %s91 = sphi 0, %s90
    %s105 = sphi 0, %s91
    %s109 = sphi 0, %s109
    %s111 = sphi 0, %s109
    %s112 = sphi 0, %s111
    %s126 = sphi 0, %s112
    %s130 = sphi 0, %s130
    %s132 = sphi 0, %s130
    %s133 = sphi 0, %s132
    %s147 = sphi 0, %s133
    %s151 = sphi 0, %s151
    %s153 = sphi 0, %s151
    %s154 = sphi 0, %s153
    %s168 = sphi 0, %s154
    %s176 = sphi 0, %s178
    %s179 = sphi 0, %s176
    %s180 = sphi 0, %s179
    %s196 = sphi 0, %s180
  $region4: #{dblock_forward.5} parent=0 // loop_header_branch
    %15 = sbr.rel (%p13) target = $region8
  $region5: #{dblock_forward.5} parent=0 // loop_body
    %s17 = ssub.s32 %s12, 1
    %s18 = ssub.s32 %s12, 2
    %s25 = sadd.s32 1, %s20
    %p26 = scmp.ge.s32.totalorder %s25, 1
    %s27 = scalar_select %p26, 0, %s25
    %s28 = sadd.s32 1, %s19
    %s29 = scalar_select %p26, %s28, %s19
    %p30 = scmp.ge.s32.totalorder %s29, 2
    %s31 = scalar_select %p30, 0, %s29
    %s32 = ssub.s32 %s19, %s31
    %s33 = ssub.s32 %s20, %s27
    %s34 = sor.u32 %s32, %s33
    %p35 = scmp.eq.s32.totalorder %s34, 0
    %s37 = sadd.s32 %s36, 1
    %s38 = scalar_select %p35, %s36, %s37
    %p41 = pneg %p35
    %p42 = scmp.eq.s32.totalorder %s12, 1
    %p43 = por %p41, %p42
    %p44 = scmp.ne.s32.totalorder %s36, %s39
    %p45 = scmp.eq.s32.totalorder %s12, 0
    %p46 = por %p44, %p45
    %p47 = scmp.ne.s32.totalorder %s36, %s39
    %p48 = scmp.eq.s32.totalorder %s17, 1
    %p49 = por %p47, %p48
    %p50 = scmp.ne.s32.totalorder %s39, %s40
    %p51 = scmp.eq.s32.totalorder %s17, 0
    %p52 = por %p50, %p51
    %p53 = scmp.ne.s32.totalorder %s39, %s40
    %p54 = scmp.eq.s32.totalorder %s18, 1
    %p55 = por %p53, %p54
    %p57 = scmp.ne.s32.totalorder %s40, %s56
    %p58 = scmp.eq.s32.totalorder %s18, 0
    %p59 = por %p57, %p58
    %s60 = ssub.s32 %s19, %s31
    %s61 = ssub.s32 %s20, %s27
    %s62 = sor.u32 %s60, %s61
    %p63 = scmp.eq.s32.totalorder %s62, 0
    %s65 = sadd.s32 %s64, 1
    %s66 = scalar_select %p63, %s64, %s65
    %p69 = pneg %p63
    %p70 = scmp.eq.s32.totalorder %s12, 1
    %p71 = por %p69, %p70
    %p72 = scmp.ne.s32.totalorder %s64, %s67
    %p73 = scmp.eq.s32.totalorder %s12, 0
    %p74 = por %p72, %p73
    %p75 = scmp.ne.s32.totalorder %s64, %s67
    %p76 = scmp.eq.s32.totalorder %s17, 1
    %p77 = por %p75, %p76
    %p78 = scmp.ne.s32.totalorder %s67, %s68
    %p79 = scmp.eq.s32.totalorder %s17, 0
    %p80 = por %p78, %p79
    %p81 = scmp.ne.s32.totalorder %s67, %s68
    %p82 = scmp.eq.s32.totalorder %s18, 1
    %p83 = por %p81, %p82
    %p85 = scmp.ne.s32.totalorder %s68, %s84
    %p86 = scmp.eq.s32.totalorder %s18, 0
    %p87 = por %p85, %p86
    %s89 = sadd.s32 %s88, 1
    %p92 = scmp.eq.s32.totalorder %s12, 1
    %p93 = scmp.ne.s32.totalorder %s88, %s90
    %p94 = scmp.eq.s32.totalorder %s12, 0
    %p95 = por %p93, %p94
    %p96 = scmp.ne.s32.totalorder %s88, %s90
    %p97 = scmp.eq.s32.totalorder %s17, 1
    %p98 = por %p96, %p97
    %p99 = scmp.ne.s32.totalorder %s90, %s91
    %p100 = scmp.eq.s32.totalorder %s17, 0
    %p101 = por %p99, %p100
    %p102 = scmp.ne.s32.totalorder %s90, %s91
    %p103 = scmp.eq.s32.totalorder %s18, 1
    %p104 = por %p102, %p103
    %p106 = scmp.ne.s32.totalorder %s91, %s105
    %p107 = scmp.eq.s32.totalorder %s18, 0
    %p108 = por %p106, %p107
    %s110 = sadd.s32 %s109, 1
    %p113 = scmp.eq.s32.totalorder %s12, 1
    %p114 = scmp.ne.s32.totalorder %s109, %s111
    %p115 = scmp.eq.s32.totalorder %s12, 0
    %p116 = por %p114, %p115
    %p117 = scmp.ne.s32.totalorder %s109, %s111
    %p118 = scmp.eq.s32.totalorder %s17, 1
    %p119 = por %p117, %p118
    %p120 = scmp.ne.s32.totalorder %s111, %s112
    %p121 = scmp.eq.s32.totalorder %s17, 0
    %p122 = por %p120, %p121
    %p123 = scmp.ne.s32.totalorder %s111, %s112
    %p124 = scmp.eq.s32.totalorder %s18, 1
    %p125 = por %p123, %p124
    %p127 = scmp.ne.s32.totalorder %s112, %s126
    %p128 = scmp.eq.s32.totalorder %s18, 0
    %p129 = por %p127, %p128
    %s131 = sadd.s32 %s130, 1
    %p134 = scmp.eq.s32.totalorder %s12, 1
    %p135 = scmp.ne.s32.totalorder %s130, %s132
    %p136 = scmp.eq.s32.totalorder %s12, 0
    %p137 = por %p135, %p136
    %p138 = scmp.ne.s32.totalorder %s130, %s132
    %p139 = scmp.eq.s32.totalorder %s17, 1
    %p140 = por %p138, %p139
    %p141 = scmp.ne.s32.totalorder %s132, %s133
    %p142 = scmp.eq.s32.totalorder %s17, 0
    %p143 = por %p141, %p142
    %p144 = scmp.ne.s32.totalorder %s132, %s133
    %p145 = scmp.eq.s32.totalorder %s18, 1
    %p146 = por %p144, %p145
    %p148 = scmp.ne.s32.totalorder %s133, %s147
    %p149 = scmp.eq.s32.totalorder %s18, 0
    %p150 = por %p148, %p149
    %s152 = sadd.s32 %s151, 1
    %p155 = scmp.eq.s32.totalorder %s12, 1
    %p156 = scmp.ne.s32.totalorder %s151, %s153
    %p157 = scmp.eq.s32.totalorder %s12, 0
    %p158 = por %p156, %p157
    %p159 = scmp.ne.s32.totalorder %s151, %s153
    %p160 = scmp.eq.s32.totalorder %s17, 1
    %p161 = por %p159, %p160
    %p162 = scmp.ne.s32.totalorder %s153, %s154
    %p163 = scmp.eq.s32.totalorder %s17, 0
    %p164 = por %p162, %p163
    %p165 = scmp.ne.s32.totalorder %s153, %s154
    %p166 = scmp.eq.s32.totalorder %s18, 1
    %p167 = por %p165, %p166
    %p169 = scmp.ne.s32.totalorder %s154, %s168
    %p170 = scmp.eq.s32.totalorder %s18, 0
    %p171 = por %p169, %p170
    %s172 = ssub.s32 %s19, %s31
    %s173 = ssub.s32 %s20, %s27
    %s174 = sor.u32 %s172, %s173
    %p175 = scmp.eq.s32.totalorder %s174, 0
    %s177 = sadd.s32 %s176, 1
    %s178 = scalar_select %p175, %s176, %s177
    %p181 = pneg %p175
    %p182 = scmp.eq.s32.totalorder %s12, 1
    %p183 = por %p181, %p182
    %p184 = scmp.ne.s32.totalorder %s176, %s179
    %p185 = scmp.eq.s32.totalorder %s12, 0
    %p186 = por %p184, %p185
    %p187 = scmp.ne.s32.totalorder %s176, %s179
    %p188 = scmp.eq.s32.totalorder %s17, 1
    %p189 = por %p187, %p188
    %p190 = scmp.ne.s32.totalorder %s179, %s180
    %p191 = scmp.eq.s32.totalorder %s17, 0
    %p192 = por %p190, %p191
    %p193 = scmp.ne.s32.totalorder %s179, %s180
    %p194 = scmp.eq.s32.totalorder %s18, 1
    %p195 = por %p193, %p194
    %p197 = scmp.ne.s32.totalorder %s180, %s196
    %p198 = scmp.eq.s32.totalorder %s18, 0
    %p199 = por %p197, %p198
    %p200 = scmp.le.s32.totalorder 1, %s12
    %p201 = scmp.lt.s32.totalorder %s12, 3
    %p202 = pnand %p200, %p201
    %p203 = pneg %p202
    // Predicated region
    $region9: #{dblock_forward.5} parent=5 // pred_check
      _
    $region10: #{dblock_forward.5} parent=5 // pred_check_branch
      %205 = sbr.rel (%p202) target = $region12
    $region11: #{dblock_forward.5} parent=5 // pred_region
      %s206 = ssub.s32 %s12, 1
      // Predicated region
      $region13: #{dblock_forward.5} parent=11 // pred_check
        %p207 = pneg %p101
      $region14: #{dblock_forward.5} parent=11 // pred_check_branch
        %209 = sbr.rel (%p207) target = $region16
      $region15: #{dblock_forward.5} parent=11 // pred_region
        _
      $region16: #{dblock_forward.5} parent=11 // pred_fallthru
        _
      // Predicated region
      $region17: #{dblock_forward.5} parent=11 // pred_check
        %p210 = pneg %p122
      $region18: #{dblock_forward.5} parent=11 // pred_check_branch
        %212 = sbr.rel (%p210) target = $region20
      $region19: #{dblock_forward.5} parent=11 // pred_region
        _
      $region20: #{dblock_forward.5} parent=11 // pred_fallthru
        _
      // Predicated region
      $region21: #{dblock_forward.5} parent=11 // pred_check
        %p213 = pneg %p143
      $region22: #{dblock_forward.5} parent=11 // pred_check_branch
        %215 = sbr.rel (%p213) target = $region24
      $region23: #{dblock_forward.5} parent=11 // pred_region
        _
      $region24: #{dblock_forward.5} parent=11 // pred_fallthru
        _
      // Predicated region
      $region25: #{dblock_forward.5} parent=11 // pred_check
        %p216 = pneg %p164
      $region26: #{dblock_forward.5} parent=11 // pred_check_branch
        %218 = sbr.rel (%p216) target = $region28
      $region27: #{dblock_forward.5} parent=11 // pred_region
        _
      $region28: #{dblock_forward.5} parent=11 // pred_fallthru
        _
    $region12: #{dblock_forward.5} parent=5 // pred_fallthru
      _
    %p219 = scmp.lt.s32.totalorder %s12, 2
    // Predicated region
    $region29: #{dblock_forward.5} parent=5 // pred_check
      %p220 = pneg %p219
    $region30: #{dblock_forward.5} parent=5 // pred_check_branch
      %222 = sbr.rel (%p220) target = $region32
    $region31: #{dblock_forward.5} parent=5 // pred_region
      // Predicated region
      $region33: #{dblock_forward.5} parent=31 // pred_check
        %p223 = pneg %p46
      $region34: #{dblock_forward.5} parent=31 // pred_check_branch
        %225 = sbr.rel (%p223) target = $region36
      $region35: #{dblock_forward.5} parent=31 // pred_region
        %p226 = scmp.lt.s32.totalorder %s19, 1
        %s227 = scalar_select %p226, %s19, 1
        %p228 = scmp.lt.s32.totalorder %s20, 0
        %s229 = scalar_select %p228, %s20, 0
        %s230 = sadd.s32 %s229, %s227
        %s231 = smul.addr %s230, 4
        %s232 = scalar_lea.vmem %s0, %s231
      $region36: #{dblock_forward.5} parent=31 // pred_fallthru
        _
      // Predicated region
      $region37: #{dblock_forward.5} parent=31 // pred_check
        %p233 = pneg %p74
      $region38: #{dblock_forward.5} parent=31 // pred_check_branch
        %235 = sbr.rel (%p233) target = $region40
      $region39: #{dblock_forward.5} parent=31 // pred_region
        %p236 = scmp.lt.s32.totalorder %s19, 1
        %s237 = scalar_select %p236, %s19, 1
        %p238 = scmp.lt.s32.totalorder %s20, 0
        %s239 = scalar_select %p238, %s20, 0
        %s240 = sadd.s32 %s239, %s237
        %s241 = smul.addr %s240, 4
        %s242 = scalar_lea.vmem %s1, %s241
      $region40: #{dblock_forward.5} parent=31 // pred_fallthru
        _
    $region32: #{dblock_forward.5} parent=5 // pred_fallthru
      _
    %p243 = scmp.le.s32.totalorder 1, %s12
    %p244 = scmp.lt.s32.totalorder %s12, 3
    %p245 = pnand %p243, %p244
    %p246 = pneg %p245
    // Predicated region
    $region41: #{dblock_forward.5} parent=5 // pred_check
      _
    $region42: #{dblock_forward.5} parent=5 // pred_check_branch
      %248 = sbr.rel (%p245) target = $region44
    $region43: #{dblock_forward.5} parent=5 // pred_region
      %s249 = ssub.s32 %s12, 1
      %p250 = scmp.lt.s32.totalorder %s21, 1
      %s251 = scalar_select %p250, %s21, 1
      %p252 = scmp.lt.s32.totalorder %s22, 0
      %s253 = scalar_select %p252, %s22, 0
      %s254 = sadd.s32 %s253, %s251
      %s255 = smul.addr %s254, 4
      %s256 = scalar_lea.vmem %s0, %s255
      %p257 = pneg %p52
      %p258 = pneg %p49
      %p259 = scmp.lt.s32.totalorder %s21, 1
      %s260 = scalar_select %p259, %s21, 1
      %p261 = scmp.lt.s32.totalorder %s22, 0
      %s262 = scalar_select %p261, %s22, 0
      %s263 = sadd.s32 %s262, %s260
      %s264 = smul.addr %s263, 4
      %s265 = scalar_lea.vmem %s1, %s264
      %p266 = pneg %p80
      %p267 = pneg %p77
      %p268 = pneg %p101
      %p269 = pneg %p98
      %p270 = pneg %p122
      %p271 = pneg %p119
      %p272 = pneg %p143
      %p273 = pneg %p140
      %p274 = pneg %p164
      %p275 = pneg %p161
      %p276 = pneg %p192
      %p277 = pneg %p189
      %p278 = scmp.lt.s32.totalorder %s21, 1
      %s279 = scalar_select %p278, %s21, 1
      %p280 = scmp.lt.s32.totalorder %s22, 0
      %s281 = scalar_select %p280, %s22, 0
      %s282 = sadd.s32 %s281, %s279
      %s283 = smul.addr %s282, 4
      %s284 = scalar_lea.vmem %s6, %s283
      %p285 = scmp.lt.s32.totalorder %s21, 1
      %s286 = scalar_select %p285, %s21, 1
      %p287 = scmp.lt.s32.totalorder %s22, 0
      %s288 = scalar_select %p287, %s22, 0
      %s289 = sadd.s32 %s288, %s286
      %s290 = smul.addr %s289, 4
      %s291 = scalar_lea.vmem %s0, %s290
      %p292 = scmp.lt.s32.totalorder %s21, 1
      %s293 = scalar_select %p292, %s21, 1
      %p294 = scmp.lt.s32.totalorder %s22, 0
      %s295 = scalar_select %p294, %s22, 0
      %s296 = sadd.s32 %s295, %s293
      %s297 = smul.addr %s296, 4
      %s298 = scalar_lea.vmem %s1, %s297
      %p299 = scmp.lt.s32.totalorder %s21, 1
      %s300 = scalar_select %p299, %s21, 1
      %p301 = scmp.lt.s32.totalorder %s22, 0
      %s302 = scalar_select %p301, %s22, 0
      %s303 = sadd.s32 %s302, %s300
      %s304 = smul.addr %s303, 4
      %s305 = scalar_lea.vmem %s6, %s304
      %v307 = vld [vmem:[%s298] sm:$0xf]
      %v308 = vpack.c.bf16 %v307, %v307
      %v309 = vld [vmem:[%s2] sm:$0x3]
      %v310 = vld [vmem:[%s3] sm:$0x1]
      %v312 = vlaneseq
      %v313 = vshrl.u32 %v312, 7
      %v314 = vsub.s32 0, %v313
      %v315 = vrot.slane %v310, %v314
      %vm317 = vcmask 31744
      %v319 = vsel %vm317, %v308, 0
      %vm321 = vcmask 1041408
      %v323 = vsel %vm321, %v309, 0
      %325 = vmatprep.subr.bf16.mxu0 0
      %326 = vmatpush1.bf16.msra.mxu0 0
      %327 = vmatprep.subr.bf16.mxu0 0
      %328 = vmatpush1.bf16.msra.mxu0 0
      %329 = vmatprep.subr.bf16.mxu0 0
      %330 = vmatpush1.bf16.msra.mxu0 0
      %331 = vmatprep.subr.bf16.mxu0 0
      %332 = vmatpush1.bf16.msra.mxu0 0
      %333 = vmatprep.subr.bf16.mxu0 0
      %334 = vmatpush1.bf16.msra.mxu0 0
      %335 = vmatprep.subr.bf16.mxu0 0
      %336 = vmatpush1.bf16.msra.mxu0 0
      %337 = vmatprep.subr.bf16.mxu0 0
      %338 = vmatpush1.bf16.msra.mxu0 0
      %339 = vmatprep.subr.bf16.mxu0 0
      %340 = vmatpush1.bf16.msra.mxu0 %v323
      %341 = vmatprep.subr.bf16.mxu0 0
      %342 = vmatpush2.bf16.msra.mxu0 0
      %343 = vmatprep.subr.bf16.mxu0 0
      %344 = vmatpush2.bf16.msra.mxu0 0
      %345 = vmatprep.subr.bf16.mxu0 0
      %346 = vmatpush2.bf16.msra.mxu0 0
      %347 = vmatprep.subr.bf16.mxu0 0
      %348 = vmatpush2.bf16.msra.mxu0 0
      %349 = vmatprep.subr.bf16.mxu0 0
      %350 = vmatpush2.bf16.msra.mxu0 0
      %351 = vmatprep.subr.bf16.mxu0 0
      %352 = vmatpush2.bf16.msra.mxu0 0
      %353 = vmatprep.subr.bf16.mxu0 0
      %354 = vmatpush2.bf16.msra.mxu0 0
      %355 = vmatprep.subr.bf16.mxu0 0
      %356 = vmatpush2.bf16.msra.mxu0 0
      %357 = vmatprep.mubr.bf16.mxu0 0
      %358 = vmatmul.mubr.bf16.gmra.mxu0 %v319
      %v359 = vpop.f32.mrf.mxu0
      %v360 = vadd.f32 %v315, %v359
      %v361 = vpop.f32.mrf.mxu0
      %v362 = vpop.f32.mrf.mxu0
      %v363 = vpop.f32.mrf.mxu0
      %364 = vdwg.mxu0
      %v365 = vld [vmem:[%s291] sm:$0xf]
      %v366 = vld [vmem:[%s4] sm:$0x1]
      %v368 = vlaneseq
      %v369 = vshrl.u32 %v368, 7
      %v370 = vsub.s32 0, %v369
      %v371 = vrot.slane %v366, %v370
      %v373 = vmul.f32 %v365, %v371
      %v374 = vld [vmem:[%s5] sm:$0x1]
      %v376 = vlaneseq
      %v377 = vshrl.u32 %v376, 7
      %v378 = vsub.s32 0, %v377
      %v379 = vrot.slane %v374, %v378
      %v381 = vadd.f32 %v373, %v379
      %v382 = vadd.f32 %v381, %v360
      %vm383 = vcmp.ge.f32.partialorder %v382, 0.0
      %v384 = vmul.f32 %v382, 0.01
      %v385 = vsel %vm383, %v382, %v384
      %386 = vst [vmem:[%s305] sm:$0xf] %v385
      %p387 = scmp.lt.s32.totalorder %s21, 1
      %s388 = scalar_select %p387, %s21, 1
      %p389 = scmp.lt.s32.totalorder %s22, 0
      %s390 = scalar_select %p389, %s22, 0
      %s391 = sadd.s32 %s390, %s388
      %s392 = smul.addr %s391, 4
      %s393 = scalar_lea.vmem %s6, %s392
      // Predicated region
      $region45: #{dblock_forward.5} parent=43 // pred_check
        %p394 = pneg %p189
      $region46: #{dblock_forward.5} parent=43 // pred_check_branch
        %396 = sbr.rel (%p394) target = $region48
      $region47: #{dblock_forward.5} parent=43 // pred_region
        _
      $region48: #{dblock_forward.5} parent=43 // pred_fallthru
        _
    $region44: #{dblock_forward.5} parent=5 // pred_fallthru
      _
    %p397 = scmp.le.s32.totalorder 2, %s12
    // Predicated region
    $region49: #{dblock_forward.5} parent=5 // pred_check
      %p398 = pneg %p397
    $region50: #{dblock_forward.5} parent=5 // pred_check_branch
      %400 = sbr.rel (%p398) target = $region52
    $region51: #{dblock_forward.5} parent=5 // pred_region
      %s401 = ssub.s32 %s12, 2
      // Predicated region
      $region53: #{dblock_forward.5} parent=51 // pred_check
        %p402 = pneg %p195
      $region54: #{dblock_forward.5} parent=51 // pred_check_branch
        %404 = sbr.rel (%p402) target = $region56
      $region55: #{dblock_forward.5} parent=51 // pred_region
        %p405 = scmp.lt.s32.totalorder %s23, 1
        %s406 = scalar_select %p405, %s23, 1
        %p407 = scmp.lt.s32.totalorder %s24, 0
        %s408 = scalar_select %p407, %s24, 0
        %s409 = sadd.s32 %s408, %s406
        %s410 = smul.addr %s409, 4
        %s411 = scalar_lea.vmem %s6, %s410
      $region56: #{dblock_forward.5} parent=51 // pred_fallthru
        _
    $region52: #{dblock_forward.5} parent=5 // pred_fallthru
      _
  $region6: #{dblock_forward.5} parent=0 // loop_footer
    %s16 = sadd.s32 1, %s12
  $region7: #{dblock_forward.5} parent=0 // loop_footer_branch
    %11 = sbr.rel target = $region3
  $region8: #{dblock_forward.5} parent=0 // loop_exit
    _

// kernel: dblock_forward.3
$region0: #{dblock_forward.3}
  #allocation0 [shape = 'u32[]', space=smem, size = 0x4, offset = 0x4, fixed_abs, tag = 'smem constant byte address 0x4 - core index']
  #allocation1 [shape = 'u32[144,128]{1,0:T(1,128)}', space=vmem, size = 0x12000, scoped, tag = 'internal scratch']
  %s0 = inlined_call_operand.vmem [shape: f32[2,10,4], index: 0, kind: input, shape index: {}]
  %s1 = inlined_call_operand.vmem [shape: bf16[3,4,128], index: 1, kind: input, shape index: {}]
  %s2 = inlined_call_operand.vmem [shape: f32[1,128], index: 2, kind: input, shape index: {}]
  %s3 = inlined_call_operand.vmem [shape: f32[2,8,128], index: 3, kind: output, shape index: {0}]
  %s4 = inlined_call_operand.vmem [shape: f32[2,2,128], index: 4, kind: output, shape index: {1}]
  %5 = xla_tuple %s3, %s4
  %s6 = sld [smem:[#allocation0]]
  $region57: #{dblock_forward.3} parent=0
    _
  %s8 = ssub.s32 1, %s6
  %s9 = scalar_select 0, %s8, %s6
  loop: start=0, step=1, limit=4
  $region2: #{dblock_forward.3} parent=0 // loop_pre_header
    _
  $region3: #{dblock_forward.3} parent=0 // loop_header
    %s11 = sphi 0, %s15
    %p12 = scmp.ge.s32.totalorder %s11, 4
    %s18 = sphi 0, %s30
    %s19 = sphi 0, %s26
    %s20 = sphi 0, %s18
    %s21 = sphi 0, %s19
    %s22 = sphi 0, %s20
    %s23 = sphi 0, %s21
    %s33 = sphi 0, %s35
    %s36 = sphi 0, %s33
    %s37 = sphi 0, %s36
    %s53 = sphi 0, %s37
    %s57 = sphi 0, %s57
    %s59 = sphi 0, %s57
    %s60 = sphi 0, %s59
    %s74 = sphi 0, %s60
    %s78 = sphi 0, %s78
    %s80 = sphi 0, %s78
    %s81 = sphi 0, %s80
    %s95 = sphi 0, %s81
    %s103 = sphi 0, %s105
    %s106 = sphi 0, %s103
    %s107 = sphi 0, %s106
    %s123 = sphi 0, %s107
    %s129 = sphi 0, %s131
    %s132 = sphi 0, %s129
    %s133 = sphi 0, %s132
    %s149 = sphi 0, %s133
  $region4: #{dblock_forward.3} parent=0 // loop_header_branch
    %14 = sbr.rel (%p12) target = $region8
  $region5: #{dblock_forward.3} parent=0 // loop_body
    %s16 = ssub.s32 %s11, 1
    %s17 = ssub.s32 %s11, 2
    %s24 = sadd.s32 1, %s19
    %p25 = scmp.ge.s32.totalorder %s24, 1
    %s26 = scalar_select %p25, 0, %s24
    %s27 = sadd.s32 1, %s18
    %s28 = scalar_select %p25, %s27, %s18
    %p29 = scmp.ge.s32.totalorder %s28, 2
    %s30 = scalar_select %p29, 0, %s28
    %s31 = ssub.s32 %s18, %s30
    %p32 = scmp.eq.s32.totalorder %s31, 0
    %s34 = sadd.s32 %s33, 1
    %s35 = scalar_select %p32, %s33, %s34
    %p38 = pneg %p32
    %p39 = scmp.eq.s32.totalorder %s11, 1
    %p40 = por %p38, %p39
    %p41 = scmp.ne.s32.totalorder %s33, %s36
    %p42 = scmp.eq.s32.totalorder %s11, 0
    %p43 = por %p41, %p42
    %p44 = scmp.ne.s32.totalorder %s33, %s36
    %p45 = scmp.eq.s32.totalorder %s16, 1
    %p46 = por %p44, %p45
    %p47 = scmp.ne.s32.totalorder %s36, %s37
    %p48 = scmp.eq.s32.totalorder %s16, 0
    %p49 = por %p47, %p48
    %p50 = scmp.ne.s32.totalorder %s36, %s37
    %p51 = scmp.eq.s32.totalorder %s17, 1
    %p52 = por %p50, %p51
    %p54 = scmp.ne.s32.totalorder %s37, %s53
    %p55 = scmp.eq.s32.totalorder %s17, 0
    %p56 = por %p54, %p55
    %s58 = sadd.s32 %s57, 1
    %p61 = scmp.eq.s32.totalorder %s11, 1
    %p62 = scmp.ne.s32.totalorder %s57, %s59
    %p63 = scmp.eq.s32.totalorder %s11, 0
    %p64 = por %p62, %p63
    %p65 = scmp.ne.s32.totalorder %s57, %s59
    %p66 = scmp.eq.s32.totalorder %s16, 1
    %p67 = por %p65, %p66
    %p68 = scmp.ne.s32.totalorder %s59, %s60
    %p69 = scmp.eq.s32.totalorder %s16, 0
    %p70 = por %p68, %p69
    %p71 = scmp.ne.s32.totalorder %s59, %s60
    %p72 = scmp.eq.s32.totalorder %s17, 1
    %p73 = por %p71, %p72
    %p75 = scmp.ne.s32.totalorder %s60, %s74
    %p76 = scmp.eq.s32.totalorder %s17, 0
    %p77 = por %p75, %p76
    %s79 = sadd.s32 %s78, 1
    %p82 = scmp.eq.s32.totalorder %s11, 1
    %p83 = scmp.ne.s32.totalorder %s78, %s80
    %p84 = scmp.eq.s32.totalorder %s11, 0
    %p85 = por %p83, %p84
    %p86 = scmp.ne.s32.totalorder %s78, %s80
    %p87 = scmp.eq.s32.totalorder %s16, 1
    %p88 = por %p86, %p87
    %p89 = scmp.ne.s32.totalorder %s80, %s81
    %p90 = scmp.eq.s32.totalorder %s16, 0
    %p91 = por %p89, %p90
    %p92 = scmp.ne.s32.totalorder %s80, %s81
    %p93 = scmp.eq.s32.totalorder %s17, 1
    %p94 = por %p92, %p93
    %p96 = scmp.ne.s32.totalorder %s81, %s95
    %p97 = scmp.eq.s32.totalorder %s17, 0
    %p98 = por %p96, %p97
    %s99 = ssub.s32 %s18, %s30
    %s100 = ssub.s32 %s19, %s26
    %s101 = sor.u32 %s99, %s100
    %p102 = scmp.eq.s32.totalorder %s101, 0
    %s104 = sadd.s32 %s103, 1
    %s105 = scalar_select %p102, %s103, %s104
    %p108 = pneg %p102
    %p109 = scmp.eq.s32.totalorder %s11, 1
    %p110 = por %p108, %p109
    %p111 = scmp.ne.s32.totalorder %s103, %s106
    %p112 = scmp.eq.s32.totalorder %s11, 0
    %p113 = por %p111, %p112
    %p114 = scmp.ne.s32.totalorder %s103, %s106
    %p115 = scmp.eq.s32.totalorder %s16, 1
    %p116 = por %p114, %p115
    %p117 = scmp.ne.s32.totalorder %s106, %s107
    %p118 = scmp.eq.s32.totalorder %s16, 0
    %p119 = por %p117, %p118
    %p120 = scmp.ne.s32.totalorder %s106, %s107
    %p121 = scmp.eq.s32.totalorder %s17, 1
    %p122 = por %p120, %p121
    %p124 = scmp.ne.s32.totalorder %s107, %s123
    %p125 = scmp.eq.s32.totalorder %s17, 0
    %p126 = por %p124, %p125
    %s127 = ssub.s32 %s18, %s30
    %p128 = scmp.eq.s32.totalorder %s127, 0
    %s130 = sadd.s32 %s129, 1
    %s131 = scalar_select %p128, %s129, %s130
    %p134 = pneg %p128
    %p135 = scmp.eq.s32.totalorder %s11, 1
    %p136 = por %p134, %p135
    %p137 = scmp.ne.s32.totalorder %s129, %s132
    %p138 = scmp.eq.s32.totalorder %s11, 0
    %p139 = por %p137, %p138
    %p140 = scmp.ne.s32.totalorder %s129, %s132
    %p141 = scmp.eq.s32.totalorder %s16, 1
    %p142 = por %p140, %p141
    %p143 = scmp.ne.s32.totalorder %s132, %s133
    %p144 = scmp.eq.s32.totalorder %s16, 0
    %p145 = por %p143, %p144
    %p146 = scmp.ne.s32.totalorder %s132, %s133
    %p147 = scmp.eq.s32.totalorder %s17, 1
    %p148 = por %p146, %p147
    %p150 = scmp.ne.s32.totalorder %s133, %s149
    %p151 = scmp.eq.s32.totalorder %s17, 0
    %p152 = por %p150, %p151
    %p153 = scmp.le.s32.totalorder 1, %s11
    %p154 = scmp.lt.s32.totalorder %s11, 3
    %p155 = pnand %p153, %p154
    %p156 = pneg %p155
    // Predicated region
    $region9: #{dblock_forward.3} parent=5 // pred_check
      _
    $region10: #{dblock_forward.3} parent=5 // pred_check_branch
      %158 = sbr.rel (%p155) target = $region12
    $region11: #{dblock_forward.3} parent=5 // pred_region
      %s159 = ssub.s32 %s11, 1
      // Predicated region
      $region13: #{dblock_forward.3} parent=11 // pred_check
        %p160 = pneg %p70
      $region14: #{dblock_forward.3} parent=11 // pred_check_branch
        %162 = sbr.rel (%p160) target = $region16
      $region15: #{dblock_forward.3} parent=11 // pred_region
        _
      $region16: #{dblock_forward.3} parent=11 // pred_fallthru
        _
      // Predicated region
      $region17: #{dblock_forward.3} parent=11 // pred_check
        %p163 = pneg %p91
      $region18: #{dblock_forward.3} parent=11 // pred_check_branch
        %165 = sbr.rel (%p163) target = $region20
      $region19: #{dblock_forward.3} parent=11 // pred_region
        _
      $region20: #{dblock_forward.3} parent=11 // pred_fallthru
        _
    $region12: #{dblock_forward.3} parent=5 // pred_fallthru
      _
    %p166 = scmp.lt.s32.totalorder %s11, 2
    // Predicated region
    $region21: #{dblock_forward.3} parent=5 // pred_check
      %p167 = pneg %p166
    $region22: #{dblock_forward.3} parent=5 // pred_check_branch
      %169 = sbr.rel (%p167) target = $region24
    $region23: #{dblock_forward.3} parent=5 // pred_region
      // Predicated region
      $region25: #{dblock_forward.3} parent=23 // pred_check
        %p170 = pneg %p43
      $region26: #{dblock_forward.3} parent=23 // pred_check_branch
        %172 = sbr.rel (%p170) target = $region28
      $region27: #{dblock_forward.3} parent=23 // pred_region
        %p173 = scmp.lt.s32.totalorder %s18, 1
        %s174 = scalar_select %p173, %s18, 1
        %s175 = smul.addr %s174, 2
        %s176 = smul.addr %s175, 8
        %s177 = scalar_lea.vmem %s0, %s176
      $region28: #{dblock_forward.3} parent=23 // pred_fallthru
        _
    $region24: #{dblock_forward.3} parent=5 // pred_fallthru
      _
    %p178 = scmp.le.s32.totalorder 1, %s11
    %p179 = scmp.lt.s32.totalorder %s11, 3
    %p180 = pnand %p178, %p179
    %p181 = pneg %p180
    // Predicated region
    $region29: #{dblock_forward.3} parent=5 // pred_check
      _
    $region30: #{dblock_forward.3} parent=5 // pred_check_branch
      %183 = sbr.rel (%p180) target = $region32
    $region31: #{dblock_forward.3} parent=5 // pred_region
      %s184 = ssub.s32 %s11, 1
      %p185 = scmp.lt.s32.totalorder %s20, 1
      %s186 = scalar_select %p185, %s20, 1
      %s187 = smul.addr %s186, 2
      %s188 = smul.addr %s187, 8
      %s189 = scalar_lea.vmem %s0, %s188
      %p190 = pneg %p49
      %p191 = pneg %p46
      %p192 = pneg %p70
      %p193 = pneg %p67
      %p194 = pneg %p91
      %p195 = pneg %p88
      %p196 = pneg %p119
      %p197 = pneg %p116
      %p198 = scmp.lt.s32.totalorder %s20, 1
      %s199 = scalar_select %p198, %s20, 1
      %p200 = scmp.lt.s32.totalorder %s21, 0
      %s201 = scalar_select %p200, %s21, 0
      %s202 = sadd.s32 %s201, %s199
      %s203 = smul.addr %s202, 8
      %s204 = scalar_lea.vmem %s3, %s203
      %p205 = pneg %p145
      %p206 = pneg %p142
      %p207 = scmp.lt.s32.totalorder %s20, 1
      %s208 = scalar_select %p207, %s20, 1
      %s209 = smul.addr %s208, 2
      %s210 = scalar_lea.vmem %s4, %s209
      %p211 = scmp.lt.s32.totalorder %s20, 1
      %s212 = scalar_select %p211, %s20, 1
      %s213 = smul.addr %s212, 2
      %s214 = smul.addr %s213, 8
      %s215 = scalar_lea.vmem %s0, %s214
      %p216 = scmp.lt.s32.totalorder %s20, 1
      %s217 = scalar_select %p216, %s20, 1
      %p218 = scmp.lt.s32.totalorder %s21, 0
      %s219 = scalar_select %p218, %s21, 0
      %s220 = sadd.s32 %s219, %s217
      %s221 = smul.addr %s220, 8
      %s222 = scalar_lea.vmem %s3, %s221
      %p223 = scmp.lt.s32.totalorder %s20, 1
      %s224 = scalar_select %p223, %s20, 1
      %s225 = smul.addr %s224, 2
      %s226 = scalar_lea.vmem %s4, %s225
      %s228 = smul.u32 %s21, 8
      %s229 = scalar_lea.vmem %s215, %s228
      %v230 = vld [vmem:[%s229] sm:$0xff]
      %v231 = vpack.c.bf16 %v230, %v230
      %v232 = vld [vmem:[%s1] sm:$0x3]
      %s233 = sadd.s32 %s228, 1
      %s234 = scalar_lea.vmem %s215, %s233
      %v235 = vld [vmem:[%s234] sm:$0xff]
      %v236 = vpack.c.bf16 %v235, %v235
      %s237 = scalar_lea.vmem %s1, 2
      %v238 = vld [vmem:[%s237] sm:$0x3]
      %vm239 = vcmask 31744
      %v241 = vsel %vm239, %v236, 0
      %vm243 = vcmask 1041408
      %v245 = vsel %vm243, %v238, 0
      %247 = vmatprep.subr.bf16.mxu0 0
      %248 = vmatpush1.bf16.msra.mxu0 0
      %249 = vmatprep.subr.bf16.mxu0 0
      %250 = vmatpush1.bf16.msra.mxu0 0
      %251 = vmatprep.subr.bf16.mxu0 0
      %252 = vmatpush1.bf16.msra.mxu0 0
      %253 = vmatprep.subr.bf16.mxu0 0
      %254 = vmatpush1.bf16.msra.mxu0 0
      %255 = vmatprep.subr.bf16.mxu0 0
      %256 = vmatpush1.bf16.msra.mxu0 0
      %257 = vmatprep.subr.bf16.mxu0 0
      %258 = vmatpush1.bf16.msra.mxu0 0
      %259 = vmatprep.subr.bf16.mxu0 0
      %260 = vmatpush1.bf16.msra.mxu0 0
      %261 = vmatprep.subr.bf16.mxu0 0
      %262 = vmatpush1.bf16.msra.mxu0 %v245
      %263 = vmatprep.subr.bf16.mxu0 0
      %264 = vmatpush2.bf16.msra.mxu0 0
      %265 = vmatprep.subr.bf16.mxu0 0
      %266 = vmatpush2.bf16.msra.mxu0 0
      %267 = vmatprep.subr.bf16.mxu0 0
      %268 = vmatpush2.bf16.msra.mxu0 0
      %269 = vmatprep.subr.bf16.mxu0 0
      %270 = vmatpush2.bf16.msra.mxu0 0
      %271 = vmatprep.subr.bf16.mxu0 0
      %272 = vmatpush2.bf16.msra.mxu0 0
      %273 = vmatprep.subr.bf16.mxu0 0
      %274 = vmatpush2.bf16.msra.mxu0 0
      %275 = vmatprep.subr.bf16.mxu0 0
      %276 = vmatpush2.bf16.msra.mxu0 0
      %277 = vmatprep.subr.bf16.mxu0 0
      %278 = vmatpush2.bf16.msra.mxu0 0
      %279 = vmatprep.mubr.bf16.mxu0 0
      %280 = vmatmul.mubr.bf16.gmra.mxu0 %v241
      %v281 = vpop.f32.mrf.mxu0
      %v282 = vadd.f32 0.0, %v281
      %v283 = vpop.f32.mrf.mxu0
      %v284 = vpop.f32.mrf.mxu0
      %v285 = vpop.f32.mrf.mxu0
      %286 = vdwg.mxu0
      %v288 = vsel %vm239, %v231, 0
      %v291 = vsel %vm243, %v232, 0
      %293 = vmatprep.subr.bf16.mxu0 0
      %294 = vmatpush1.bf16.msra.mxu0 0
      %295 = vmatprep.subr.bf16.mxu0 0
      %296 = vmatpush1.bf16.msra.mxu0 0
      %297 = vmatprep.subr.bf16.mxu0 0
      %298 = vmatpush1.bf16.msra.mxu0 0
      %299 = vmatprep.subr.bf16.mxu0 0
      %300 = vmatpush1.bf16.msra.mxu0 0
      %301 = vmatprep.subr.bf16.mxu0 0
      %302 = vmatpush1.bf16.msra.mxu0 0
      %303 = vmatprep.subr.bf16.mxu0 0
      %304 = vmatpush1.bf16.msra.mxu0 0
      %305 = vmatprep.subr.bf16.mxu0 0
      %306 = vmatpush1.bf16.msra.mxu0 0
      %307 = vmatprep.subr.bf16.mxu0 0
      %308 = vmatpush1.bf16.msra.mxu0 %v291
      %309 = vmatprep.subr.bf16.mxu0 0
      %310 = vmatpush2.bf16.msra.mxu0 0
      %311 = vmatprep.subr.bf16.mxu0 0
      %312 = vmatpush2.bf16.msra.mxu0 0
      %313 = vmatprep.subr.bf16.mxu0 0
      %314 = vmatpush2.bf16.msra.mxu0 0
      %315 = vmatprep.subr.bf16.mxu0 0
      %316 = vmatpush2.bf16.msra.mxu0 0
      %317 = vmatprep.subr.bf16.mxu0 0
      %318 = vmatpush2.bf16.msra.mxu0 0
      %319 = vmatprep.subr.bf16.mxu0 0
      %320 = vmatpush2.bf16.msra.mxu0 0
      %321 = vmatprep.subr.bf16.mxu0 0
      %322 = vmatpush2.bf16.msra.mxu0 0
      %323 = vmatprep.subr.bf16.mxu0 0
      %324 = vmatpush2.bf16.msra.mxu0 0
      %325 = vmatprep.mubr.bf16.mxu0 0
      %326 = vmatmul.mubr.bf16.gmra.mxu0 %v288
      %v327 = vpop.f32.mrf.mxu0
      %v328 = vadd.f32 %v282, %v327
      %v329 = vpop.f32.mrf.mxu0
      %v330 = vpop.f32.mrf.mxu0
      %v331 = vpop.f32.mrf.mxu0
      %332 = vdwg.mxu0
      %s333 = sadd.s32 %s228, 2
      %s334 = scalar_lea.vmem %s215, %s333
      %v335 = vld [vmem:[%s334] sm:$0xff]
      %v336 = vpack.c.bf16 %v335, %v335
      %s337 = scalar_lea.vmem %s1, 4
      %v338 = vld [vmem:[%s337] sm:$0x3]
      %v340 = vsel %vm239, %v336, 0
      %v343 = vsel %vm243, %v338, 0
      %345 = vmatprep.subr.bf16.mxu0 0
      %346 = vmatpush1.bf16.msra.mxu0 0
      %347 = vmatprep.subr.bf16.mxu0 0
      %348 = vmatpush1.bf16.msra.mxu0 0
      %349 = vmatprep.subr.bf16.mxu0 0
      %350 = vmatpush1.bf16.msra.mxu0 0
      %351 = vmatprep.subr.bf16.mxu0 0
      %352 = vmatpush1.bf16.msra.mxu0 0
      %353 = vmatprep.subr.bf16.mxu0 0
      %354 = vmatpush1.bf16.msra.mxu0 0
      %355 = vmatprep.subr.bf16.mxu0 0
      %356 = vmatpush1.bf16.msra.mxu0 0
      %357 = vmatprep.subr.bf16.mxu0 0
      %358 = vmatpush1.bf16.msra.mxu0 0
      %359 = vmatprep.subr.bf16.mxu0 0
      %360 = vmatpush1.bf16.msra.mxu0 %v343
      %361 = vmatprep.subr.bf16.mxu0 0
      %362 = vmatpush2.bf16.msra.mxu0 0
      %363 = vmatprep.subr.bf16.mxu0 0
      %364 = vmatpush2.bf16.msra.mxu0 0
      %365 = vmatprep.subr.bf16.mxu0 0
      %366 = vmatpush2.bf16.msra.mxu0 0
      %367 = vmatprep.subr.bf16.mxu0 0
      %368 = vmatpush2.bf16.msra.mxu0 0
      %369 = vmatprep.subr.bf16.mxu0 0
      %370 = vmatpush2.bf16.msra.mxu0 0
      %371 = vmatprep.subr.bf16.mxu0 0
      %372 = vmatpush2.bf16.msra.mxu0 0
      %373 = vmatprep.subr.bf16.mxu0 0
      %374 = vmatpush2.bf16.msra.mxu0 0
      %375 = vmatprep.subr.bf16.mxu0 0
      %376 = vmatpush2.bf16.msra.mxu0 0
      %377 = vmatprep.mubr.bf16.mxu0 0
      %378 = vmatmul.mubr.bf16.gmra.mxu0 %v340
      %v379 = vpop.f32.mrf.mxu0
      %v380 = vadd.f32 0.0, %v379
      %v381 = vpop.f32.mrf.mxu0
      %v382 = vpop.f32.mrf.mxu0
      %v383 = vpop.f32.mrf.mxu0
      %384 = vdwg.mxu0
      %v385 = vadd.f32 %v328, %v380
      %v386 = vld [vmem:[%s2] sm:$0x1]
      %v388 = vlaneseq
      %v389 = vshrl.u32 %v388, 7
      %v390 = vsub.s32 0, %v389
      %v391 = vrot.slane %v386, %v390
      %v393 = vadd.f32 %v385, %v391
      %vm394 = vcmp.ge.f32.partialorder %v393, 0.0
      %v395 = vmul.f32 %v393, 0.01
      %v396 = vsel %vm394, %v393, %v395
      %397 = vst [vmem:[%s222] sm:$0xff] %v396
      %p398 = scmp.eq.s32.totalorder %s21, 0
      // Predicated region
      $region33: #{dblock_forward.3} parent=31 // pred_check
        %p399 = pneg %p398
      $region34: #{dblock_forward.3} parent=31 // pred_check_branch
        %401 = sbr.rel (%p399) target = $region36
      $region35: #{dblock_forward.3} parent=31 // pred_region
        %402 = vst [vmem:[%s226] sm:$0x3] 0.0
      $region36: #{dblock_forward.3} parent=31 // pred_fallthru
        _
      %v403 = vld [vmem:[%s226] sm:$0x1]
      %v404 = vrot.slane %v396, 4
      %v405 = vadd.f32 %v396, %v404
      %v406 = vrot.slane %v405, 2
      %v407 = vadd.f32 %v405, %v406
      %v408 = vrot.slane %v407, 1
      %v409 = vadd.f32 %v407, %v408
      %v410 = vadd.f32 %v403, %v409
      %411 = vst [vmem:[%s226] sm:$0x1] %v410
      %v412 = vld [vmem:[%s226 + $0x1] sm:$0x1]
      %v413 = vmul.f32 %v396, %v396
      %v414 = vrot.slane %v413, 4
      %v415 = vadd.f32 %v413, %v414
      %v416 = vrot.slane %v415, 2
      %v417 = vadd.f32 %v415, %v416
      %v418 = vrot.slane %v417, 1
      %v419 = vadd.f32 %v417, %v418
      %v420 = vadd.f32 %v412, %v419
      %421 = vst [vmem:[%s226 + $0x1] sm:$0x1] %v420
      %p422 = scmp.lt.s32.totalorder %s20, 1
      %s423 = scalar_select %p422, %s20, 1
      %p424 = scmp.lt.s32.totalorder %s21, 0
      %s425 = scalar_select %p424, %s21, 0
      %s426 = sadd.s32 %s425, %s423
      %s427 = smul.addr %s426, 8
      %s428 = scalar_lea.vmem %s3, %s427
      %p429 = scmp.lt.s32.totalorder %s20, 1
      %s430 = scalar_select %p429, %s20, 1
      %s431 = smul.addr %s430, 2
      %s432 = scalar_lea.vmem %s4, %s431
      // Predicated region
      $region37: #{dblock_forward.3} parent=31 // pred_check
        %p433 = pneg %p116
      $region38: #{dblock_forward.3} parent=31 // pred_check_branch
        %435 = sbr.rel (%p433) target = $region40
      $region39: #{dblock_forward.3} parent=31 // pred_region
        _
      $region40: #{dblock_forward.3} parent=31 // pred_fallthru
        _
      // Predicated region
      $region41: #{dblock_forward.3} parent=31 // pred_check
        %p436 = pneg %p142
      $region42: #{dblock_forward.3} parent=31 // pred_check_branch
        %438 = sbr.rel (%p436) target = $region44
      $region43: #{dblock_forward.3} parent=31 // pred_region
        _
      $region44: #{dblock_forward.3} parent=31 // pred_fallthru
        _
    $region32: #{dblock_forward.3} parent=5 // pred_fallthru
      _
    %p439 = scmp.le.s32.totalorder 2, %s11
    // Predicated region
    $region45: #{dblock_forward.3} parent=5 // pred_check
      %p440 = pneg %p439
    $region46: #{dblock_forward.3} parent=5 // pred_check_branch
      %442 = sbr.rel (%p440) target = $region48
    $region47: #{dblock_forward.3} parent=5 // pred_region
      %s443 = ssub.s32 %s11, 2
      // Predicated region
      $region49: #{dblock_forward.3} parent=47 // pred_check
        %p444 = pneg %p122
      $region50: #{dblock_forward.3} parent=47 // pred_check_branch
        %446 = sbr.rel (%p444) target = $region52
      $region51: #{dblock_forward.3} parent=47 // pred_region
        %p447 = scmp.lt.s32.totalorder %s22, 1
        %s448 = scalar_select %p447, %s22, 1
        %p449 = scmp.lt.s32.totalorder %s23, 0
        %s450 = scalar_select %p449, %s23, 0
        %s451 = sadd.s32 %s450, %s448
        %s452 = smul.addr %s451, 8
        %s453 = scalar_lea.vmem %s3, %s452
      $region52: #{dblock_forward.3} parent=47 // pred_fallthru
        _
      // Predicated region
      $region53: #{dblock_forward.3} parent=47 // pred_check
        %p454 = pneg %p148
      $region54: #{dblock_forward.3} parent=47 // pred_check_branch
        %456 = sbr.rel (%p454) target = $region56
      $region55: #{dblock_forward.3} parent=47 // pred_region
        %p457 = scmp.lt.s32.totalorder %s22, 1
        %s458 = scalar_select %p457, %s22, 1
        %s459 = smul.addr %s458, 2
        %s460 = scalar_lea.vmem %s4, %s459
      $region56: #{dblock_forward.3} parent=47 // pred_fallthru
        _
    $region48: #{dblock_forward.3} parent=5 // pred_fallthru
      _
  $region6: #{dblock_forward.3} parent=0 // loop_footer
    %s15 = sadd.s32 1, %s11
  $region7: #{dblock_forward.3} parent=0 // loop_footer_branch
    %10 = sbr.rel target = $region3
  $region8: #{dblock_forward.3} parent=0 // loop_exit
    _

// kernel: dblock_forward.4
$region0: #{dblock_forward.4}
  #allocation0 [shape = 'u32[]', space=smem, size = 0x4, offset = 0x4, fixed_abs, tag = 'smem constant byte address 0x4 - core index']
  #allocation1 [shape = 'u32[144,128]{1,0:T(1,128)}', space=vmem, size = 0x12000, scoped, tag = 'internal scratch']
  %s0 = inlined_call_operand.vmem [shape: f32[2,8,128], index: 0, kind: input, shape index: {}]
  %s1 = inlined_call_operand.vmem [shape: bf16[3,128,128], index: 1, kind: input, shape index: {}]
  %s2 = inlined_call_operand.vmem [shape: f32[1,128], index: 2, kind: input, shape index: {}]
  %s3 = inlined_call_operand.vmem [shape: f32[1,128], index: 3, kind: input, shape index: {}]
  %s4 = inlined_call_operand.vmem [shape: f32[1,128], index: 4, kind: input, shape index: {}]
  %s5 = inlined_call_operand.vmem [shape: f32[2,4,128], index: 5, kind: output, shape index: {0}]
  %s6 = inlined_call_operand.vmem [shape: f32[2,2,128], index: 6, kind: output, shape index: {1}]
  %7 = xla_tuple %s5, %s6
  %s8 = sld [smem:[#allocation0]]
  $region61: #{dblock_forward.4} parent=0
    _
  %s10 = ssub.s32 1, %s8
  %s11 = scalar_select 0, %s10, %s8
  loop: start=0, step=1, limit=4
  $region2: #{dblock_forward.4} parent=0 // loop_pre_header
    _
  $region3: #{dblock_forward.4} parent=0 // loop_header
    %s13 = sphi 0, %s17
    %p14 = scmp.ge.s32.totalorder %s13, 4
    %s23 = sphi 0, %s25
    %s26 = sphi 0, %s23
    %s27 = sphi 0, %s26
    %s43 = sphi 0, %s27
    %s47 = sphi 0, %s47
    %s49 = sphi 0, %s47
    %s50 = sphi 0, %s49
    %s64 = sphi 0, %s50
    %s68 = sphi 0, %s68
    %s70 = sphi 0, %s68
    %s71 = sphi 0, %s70
    %s85 = sphi 0, %s71
    %s89 = sphi 0, %s89
    %s91 = sphi 0, %s89
    %s92 = sphi 0, %s91
    %s106 = sphi 0, %s92
    %s110 = sphi 0, %s110
    %s112 = sphi 0, %s110
    %s113 = sphi 0, %s112
    %s127 = sphi 0, %s113
    %s133 = sphi 0, %s135
    %s136 = sphi 0, %s133
    %s137 = sphi 0, %s136
    %s153 = sphi 0, %s137
    %s159 = sphi 0, %s161
    %s162 = sphi 0, %s159
    %s163 = sphi 0, %s162
    %s179 = sphi 0, %s163
  $region4: #{dblock_forward.4} parent=0 // loop_header_branch
    %16 = sbr.rel (%p14) target = $region8
  $region5: #{dblock_forward.4} parent=0 // loop_body
    %s18 = ssub.s32 %s13, 1
    %s19 = ssub.s32 %s13, 2
    %s20 = sadd.s32 %s13, 1
    %s21 = ssub.s32 %s13, %s20
    %p22 = scmp.eq.s32.totalorder %s21, 0
    %s24 = sadd.s32 %s23, 1
    %s25 = scalar_select %p22, %s23, %s24
    %p28 = pneg %p22
    %p29 = scmp.eq.s32.totalorder %s13, 1
    %p30 = por %p28, %p29
    %p31 = scmp.ne.s32.totalorder %s23, %s26
    %p32 = scmp.eq.s32.totalorder %s13, 0
    %p33 = por %p31, %p32
    %p34 = scmp.ne.s32.totalorder %s23, %s26
    %p35 = scmp.eq.s32.totalorder %s18, 1
    %p36 = por %p34, %p35
    %p37 = scmp.ne.s32.totalorder %s26, %s27
    %p38 = scmp.eq.s32.totalorder %s18, 0
    %p39 = por %p37, %p38
    %p40 = scmp.ne.s32.totalorder %s26, %s27
    %p41 = scmp.eq.s32.totalorder %s19, 1
    %p42 = por %p40, %p41
    %p44 = scmp.ne.s32.totalorder %s27, %s43
    %p45 = scmp.eq.s32.totalorder %s19, 0
    %p46 = por %p44, %p45
    %s48 = sadd.s32 %s47, 1
    %p51 = scmp.eq.s32.totalorder %s13, 1
    %p52 = scmp.ne.s32.totalorder %s47, %s49
    %p53 = scmp.eq.s32.totalorder %s13, 0
    %p54 = por %p52, %p53
    %p55 = scmp.ne.s32.totalorder %s47, %s49
    %p56 = scmp.eq.s32.totalorder %s18, 1
    %p57 = por %p55, %p56
    %p58 = scmp.ne.s32.totalorder %s49, %s50
    %p59 = scmp.eq.s32.totalorder %s18, 0
    %p60 = por %p58, %p59
    %p61 = scmp.ne.s32.totalorder %s49, %s50
    %p62 = scmp.eq.s32.totalorder %s19, 1
    %p63 = por %p61, %p62
    %p65 = scmp.ne.s32.totalorder %s50, %s64
    %p66 = scmp.eq.s32.totalorder %s19, 0
    %p67 = por %p65, %p66
    %s69 = sadd.s32 %s68, 1
    %p72 = scmp.eq.s32.totalorder %s13, 1
    %p73 = scmp.ne.s32.totalorder %s68, %s70
    %p74 = scmp.eq.s32.totalorder %s13, 0
    %p75 = por %p73, %p74
    %p76 = scmp.ne.s32.totalorder %s68, %s70
    %p77 = scmp.eq.s32.totalorder %s18, 1
    %p78 = por %p76, %p77
    %p79 = scmp.ne.s32.totalorder %s70, %s71
    %p80 = scmp.eq.s32.totalorder %s18, 0
    %p81 = por %p79, %p80
    %p82 = scmp.ne.s32.totalorder %s70, %s71
    %p83 = scmp.eq.s32.totalorder %s19, 1
    %p84 = por %p82, %p83
    %p86 = scmp.ne.s32.totalorder %s71, %s85
    %p87 = scmp.eq.s32.totalorder %s19, 0
    %p88 = por %p86, %p87
    %s90 = sadd.s32 %s89, 1
    %p93 = scmp.eq.s32.totalorder %s13, 1
    %p94 = scmp.ne.s32.totalorder %s89, %s91
    %p95 = scmp.eq.s32.totalorder %s13, 0
    %p96 = por %p94, %p95
    %p97 = scmp.ne.s32.totalorder %s89, %s91
    %p98 = scmp.eq.s32.totalorder %s18, 1
    %p99 = por %p97, %p98
    %p100 = scmp.ne.s32.totalorder %s91, %s92
    %p101 = scmp.eq.s32.totalorder %s18, 0
    %p102 = por %p100, %p101
    %p103 = scmp.ne.s32.totalorder %s91, %s92
    %p104 = scmp.eq.s32.totalorder %s19, 1
    %p105 = por %p103, %p104
    %p107 = scmp.ne.s32.totalorder %s92, %s106
    %p108 = scmp.eq.s32.totalorder %s19, 0
    %p109 = por %p107, %p108
    %s111 = sadd.s32 %s110, 1
    %p114 = scmp.eq.s32.totalorder %s13, 1
    %p115 = scmp.ne.s32.totalorder %s110, %s112
    %p116 = scmp.eq.s32.totalorder %s13, 0
    %p117 = por %p115, %p116
    %p118 = scmp.ne.s32.totalorder %s110, %s112
    %p119 = scmp.eq.s32.totalorder %s18, 1
    %p120 = por %p118, %p119
    %p121 = scmp.ne.s32.totalorder %s112, %s113
    %p122 = scmp.eq.s32.totalorder %s18, 0
    %p123 = por %p121, %p122
    %p124 = scmp.ne.s32.totalorder %s112, %s113
    %p125 = scmp.eq.s32.totalorder %s19, 1
    %p126 = por %p124, %p125
    %p128 = scmp.ne.s32.totalorder %s113, %s127
    %p129 = scmp.eq.s32.totalorder %s19, 0
    %p130 = por %p128, %p129
    %s131 = ssub.s32 %s13, %s20
    %p132 = scmp.eq.s32.totalorder %s131, 0
    %s134 = sadd.s32 %s133, 1
    %s135 = scalar_select %p132, %s133, %s134
    %p138 = pneg %p132
    %p139 = scmp.eq.s32.totalorder %s13, 1
    %p140 = por %p138, %p139
    %p141 = scmp.ne.s32.totalorder %s133, %s136
    %p142 = scmp.eq.s32.totalorder %s13, 0
    %p143 = por %p141, %p142
    %p144 = scmp.ne.s32.totalorder %s133, %s136
    %p145 = scmp.eq.s32.totalorder %s18, 1
    %p146 = por %p144, %p145
    %p147 = scmp.ne.s32.totalorder %s136, %s137
    %p148 = scmp.eq.s32.totalorder %s18, 0
    %p149 = por %p147, %p148
    %p150 = scmp.ne.s32.totalorder %s136, %s137
    %p151 = scmp.eq.s32.totalorder %s19, 1
    %p152 = por %p150, %p151
    %p154 = scmp.ne.s32.totalorder %s137, %s153
    %p155 = scmp.eq.s32.totalorder %s19, 0
    %p156 = por %p154, %p155
    %s157 = ssub.s32 %s13, %s20
    %p158 = scmp.eq.s32.totalorder %s157, 0
    %s160 = sadd.s32 %s159, 1
    %s161 = scalar_select %p158, %s159, %s160
    %p164 = pneg %p158
    %p165 = scmp.eq.s32.totalorder %s13, 1
    %p166 = por %p164, %p165
    %p167 = scmp.ne.s32.totalorder %s159, %s162
    %p168 = scmp.eq.s32.totalorder %s13, 0
    %p169 = por %p167, %p168
    %p170 = scmp.ne.s32.totalorder %s159, %s162
    %p171 = scmp.eq.s32.totalorder %s18, 1
    %p172 = por %p170, %p171
    %p173 = scmp.ne.s32.totalorder %s162, %s163
    %p174 = scmp.eq.s32.totalorder %s18, 0
    %p175 = por %p173, %p174
    %p176 = scmp.ne.s32.totalorder %s162, %s163
    %p177 = scmp.eq.s32.totalorder %s19, 1
    %p178 = por %p176, %p177
    %p180 = scmp.ne.s32.totalorder %s163, %s179
    %p181 = scmp.eq.s32.totalorder %s19, 0
    %p182 = por %p180, %p181
    %p183 = scmp.le.s32.totalorder 1, %s13
    %p184 = scmp.lt.s32.totalorder %s13, 3
    %p185 = pnand %p183, %p184
    %p186 = pneg %p185
    // Predicated region
    $region9: #{dblock_forward.4} parent=5 // pred_check
      _
    $region10: #{dblock_forward.4} parent=5 // pred_check_branch
      %188 = sbr.rel (%p185) target = $region12
    $region11: #{dblock_forward.4} parent=5 // pred_region
      %s189 = ssub.s32 %s13, 1
      // Predicated region
      $region13: #{dblock_forward.4} parent=11 // pred_check
        %p190 = pneg %p60
      $region14: #{dblock_forward.4} parent=11 // pred_check_branch
        %192 = sbr.rel (%p190) target = $region16
      $region15: #{dblock_forward.4} parent=11 // pred_region
        _
      $region16: #{dblock_forward.4} parent=11 // pred_fallthru
        _
      // Predicated region
      $region17: #{dblock_forward.4} parent=11 // pred_check
        %p193 = pneg %p81
      $region18: #{dblock_forward.4} parent=11 // pred_check_branch
        %195 = sbr.rel (%p193) target = $region20
      $region19: #{dblock_forward.4} parent=11 // pred_region
        _
      $region20: #{dblock_forward.4} parent=11 // pred_fallthru
        _
      // Predicated region
      $region21: #{dblock_forward.4} parent=11 // pred_check
        %p196 = pneg %p102
      $region22: #{dblock_forward.4} parent=11 // pred_check_branch
        %198 = sbr.rel (%p196) target = $region24
      $region23: #{dblock_forward.4} parent=11 // pred_region
        _
      $region24: #{dblock_forward.4} parent=11 // pred_fallthru
        _
      // Predicated region
      $region25: #{dblock_forward.4} parent=11 // pred_check
        %p199 = pneg %p123
      $region26: #{dblock_forward.4} parent=11 // pred_check_branch
        %201 = sbr.rel (%p199) target = $region28
      $region27: #{dblock_forward.4} parent=11 // pred_region
        _
      $region28: #{dblock_forward.4} parent=11 // pred_fallthru
        _
    $region12: #{dblock_forward.4} parent=5 // pred_fallthru
      _
    %p202 = scmp.lt.s32.totalorder %s13, 2
    // Predicated region
    $region29: #{dblock_forward.4} parent=5 // pred_check
      %p203 = pneg %p202
    $region30: #{dblock_forward.4} parent=5 // pred_check_branch
      %205 = sbr.rel (%p203) target = $region32
    $region31: #{dblock_forward.4} parent=5 // pred_region
      // Predicated region
      $region33: #{dblock_forward.4} parent=31 // pred_check
        %p206 = pneg %p33
      $region34: #{dblock_forward.4} parent=31 // pred_check_branch
        %208 = sbr.rel (%p206) target = $region36
      $region35: #{dblock_forward.4} parent=31 // pred_region
        %p209 = scmp.lt.s32.totalorder %s13, 1
        %s210 = scalar_select %p209, %s13, 1
        %s211 = smul.addr %s210, 8
        %s212 = scalar_lea.vmem %s0, %s211
      $region36: #{dblock_forward.4} parent=31 // pred_fallthru
        _
    $region32: #{dblock_forward.4} parent=5 // pred_fallthru
      _
    %p213 = scmp.le.s32.totalorder 1, %s13
    %p214 = scmp.lt.s32.totalorder %s13, 3
    %p215 = pnand %p213, %p214
    %p216 = pneg %p215
    // Predicated region
    $region37: #{dblock_forward.4} parent=5 // pred_check
      _
    $region38: #{dblock_forward.4} parent=5 // pred_check_branch
      %218 = sbr.rel (%p215) target = $region40
    $region39: #{dblock_forward.4} parent=5 // pred_region
      %s219 = ssub.s32 %s13, 1
      %p220 = scmp.lt.s32.totalorder %s18, 1
      %s221 = scalar_select %p220, %s18, 1
      %s222 = smul.addr %s221, 8
      %s223 = scalar_lea.vmem %s0, %s222
      %p224 = pneg %p39
      %p225 = pneg %p36
      %p226 = pneg %p60
      %p227 = pneg %p57
      %p228 = pneg %p81
      %p229 = pneg %p78
      %p230 = pneg %p102
      %p231 = pneg %p99
      %p232 = pneg %p123
      %p233 = pneg %p120
      %p234 = pneg %p149
      %p235 = pneg %p146
      %p236 = scmp.lt.s32.totalorder %s18, 1
      %s237 = scalar_select %p236, %s18, 1
      %s238 = smul.addr %s237, 4
      %s239 = scalar_lea.vmem %s5, %s238
      %p240 = pneg %p175
      %p241 = pneg %p172
      %p242 = scmp.lt.s32.totalorder %s18, 1
      %s243 = scalar_select %p242, %s18, 1
      %s244 = smul.addr %s243, 2
      %s245 = scalar_lea.vmem %s6, %s244
      %p246 = scmp.lt.s32.totalorder %s18, 1
      %s247 = scalar_select %p246, %s18, 1
      %s248 = smul.addr %s247, 8
      %s249 = scalar_lea.vmem %s0, %s248
      %p250 = scmp.lt.s32.totalorder %s18, 1
      %s251 = scalar_select %p250, %s18, 1
      %s252 = smul.addr %s251, 4
      %s253 = scalar_lea.vmem %s5, %s252
      %p254 = scmp.lt.s32.totalorder %s18, 1
      %s255 = scalar_select %p254, %s18, 1
      %s256 = smul.addr %s255, 2
      %s257 = scalar_lea.vmem %s6, %s256
      %v259 = vld [vmem:[%s249] ss:$2 sm:$0xf]
      %v260 = vld [vmem:[%s3] sm:$0x1]
      %v262 = vlaneseq
      %v263 = vshrl.u32 %v262, 7
      %v264 = vsub.s32 0, %v263
      %v265 = vrot.slane %v260, %v264
      %v267 = vmul.f32 %v259, %v265
      %v268 = vld [vmem:[%s4] sm:$0x1]
      %v270 = vlaneseq
      %v271 = vshrl.u32 %v270, 7
      %v272 = vsub.s32 0, %v271
      %v273 = vrot.slane %v268, %v272
      %v275 = vadd.f32 %v267, %v273
      %v277 = vrot.slane %v275, 7
      %vm279 = vcmask 1040384
      %v280 = vsel %vm279, 0.0, %v277
      %v281 = vrot.slane %v275, 1
      %vm283 = vcmask 1042432
      %v284 = vsel %vm283, %v281, 0.0
      %v285 = vpack.c.bf16 %v280, %v280
      %v286 = vld [vmem:[%s1] sm:$0xf]
      %v287 = vld [vmem:[%s1 + $0x4] sm:$0xf]
      %v288 = vld [vmem:[%s1 + $0x8] sm:$0xf]
      %v289 = vld [vmem:[%s1 + $0xc] sm:$0xf]
      %v290 = vld [vmem:[%s1 + $0x10] sm:$0xf]
      %v291 = vld [vmem:[%s1 + $0x14] sm:$0xf]
      %v292 = vld [vmem:[%s1 + $0x18] sm:$0xf]
      %v293 = vld [vmem:[%s1 + $0x1c] sm:$0xf]
      %v294 = vld [vmem:[%s1 + $0x20] sm:$0xf]
      %v295 = vld [vmem:[%s1 + $0x24] sm:$0xf]
      %v296 = vld [vmem:[%s1 + $0x28] sm:$0xf]
      %v297 = vld [vmem:[%s1 + $0x2c] sm:$0xf]
      %v298 = vld [vmem:[%s1 + $0x30] sm:$0xf]
      %v299 = vld [vmem:[%s1 + $0x34] sm:$0xf]
      %v300 = vld [vmem:[%s1 + $0x38] sm:$0xf]
      %v301 = vld [vmem:[%s1 + $0x3c] sm:$0xf]
      %v302 = vpack.c.bf16 %v275, %v275
      %s303 = scalar_lea.vmem %s1, 64
      %v304 = vld [vmem:[%s303] sm:$0xf]
      %v305 = vld [vmem:[%s303 + $0x4] sm:$0xf]
      %v306 = vld [vmem:[%s303 + $0x8] sm:$0xf]
      %v307 = vld [vmem:[%s303 + $0xc] sm:$0xf]
      %v308 = vld [vmem:[%s303 + $0x10] sm:$0xf]
      %v309 = vld [vmem:[%s303 + $0x14] sm:$0xf]
      %v310 = vld [vmem:[%s303 + $0x18] sm:$0xf]
      %v311 = vld [vmem:[%s303 + $0x1c] sm:$0xf]
      %v312 = vld [vmem:[%s303 + $0x20] sm:$0xf]
      %v313 = vld [vmem:[%s303 + $0x24] sm:$0xf]
      %v314 = vld [vmem:[%s303 + $0x28] sm:$0xf]
      %v315 = vld [vmem:[%s303 + $0x2c] sm:$0xf]
      %v316 = vld [vmem:[%s303 + $0x30] sm:$0xf]
      %v317 = vld [vmem:[%s303 + $0x34] sm:$0xf]
      %v318 = vld [vmem:[%s303 + $0x38] sm:$0xf]
      %v319 = vld [vmem:[%s303 + $0x3c] sm:$0xf]
      %v336 = vunpack.c.l.b16 %v304
      %v337 = vunpack.c.l.b16 %v305
      %v338 = vunpack.c.l.b16 %v306
      %v339 = vunpack.c.l.b16 %v307
      %v340 = vunpack.c.l.b16 %v308
      %v341 = vunpack.c.l.b16 %v309
      %v342 = vunpack.c.l.b16 %v310
      %v343 = vunpack.c.l.b16 %v311
      %v344 = vunpack.c.l.b16 %v312
      %v345 = vunpack.c.l.b16 %v313
      %v346 = vunpack.c.l.b16 %v314
      %v347 = vunpack.c.l.b16 %v315
      %v348 = vunpack.c.l.b16 %v316
      %v349 = vunpack.c.l.b16 %v317
      %v350 = vunpack.c.l.b16 %v318
      %v351 = vunpack.c.l.b16 %v319
      %v352 = vpack.c.b16 %v337, %v336
      %v353 = vpack.c.b16 %v339, %v338
      %v354 = vpack.c.b16 %v341, %v340
      %v355 = vpack.c.b16 %v343, %v342
      %v356 = vpack.c.b16 %v345, %v344
      %v357 = vpack.c.b16 %v347, %v346
      %v358 = vpack.c.b16 %v349, %v348
      %v359 = vpack.c.b16 %v351, %v350
      %368 = vmatprep.subr.bf16.mxu0 0
      %369 = vmatpush1.bf16.msra.mxu0 %v359
      %370 = vmatprep.subr.bf16.mxu0 0
      %371 = vmatpush1.bf16.msra.mxu0 %v358
      %372 = vmatprep.subr.bf16.mxu0 0
      %373 = vmatpush1.bf16.msra.mxu0 %v357
      %374 = vmatprep.subr.bf16.mxu0 0
      %375 = vmatpush1.bf16.msra.mxu0 %v356
      %376 = vmatprep.subr.bf16.mxu0 0
      %377 = vmatpush1.bf16.msra.mxu0 %v355
      %378 = vmatprep.subr.bf16.mxu0 0
      %379 = vmatpush1.bf16.msra.mxu0 %v354
      %380 = vmatprep.subr.bf16.mxu0 0
      %381 = vmatpush1.bf16.msra.mxu0 %v353
      %382 = vmatprep.subr.bf16.mxu0 0
      %383 = vmatpush1.bf16.msra.mxu0 %v352
      %384 = vmatprep.subr.bf16.mxu0 0
      %385 = vmatpush2.bf16.msra.mxu0 0
      %386 = vmatprep.subr.bf16.mxu0 0
      %387 = vmatpush2.bf16.msra.mxu0 0
      %388 = vmatprep.subr.bf16.mxu0 0
      %389 = vmatpush2.bf16.msra.mxu0 0
      %390 = vmatprep.subr.bf16.mxu0 0
      %391 = vmatpush2.bf16.msra.mxu0 0
      %392 = vmatprep.subr.bf16.mxu0 0
      %393 = vmatpush2.bf16.msra.mxu0 0
      %394 = vmatprep.subr.bf16.mxu0 0
      %395 = vmatpush2.bf16.msra.mxu0 0
      %396 = vmatprep.subr.bf16.mxu0 0
      %397 = vmatpush2.bf16.msra.mxu0 0
      %398 = vmatprep.subr.bf16.mxu0 0
      %399 = vmatpush2.bf16.msra.mxu0 0
      %400 = vmatprep.mubr.bf16.mxu0 0
      %401 = vmatmul.mubr.bf16.gmra.mxu0 %v302
      %v402 = vpop.f32.mrf.mxu0
      %v403 = vadd.f32 0.0, %v402
      %v404 = vpop.f32.mrf.mxu0
      %v405 = vpop.f32.mrf.mxu0
      %v406 = vpop.f32.mrf.mxu0
      %407 = vdwg.mxu0
      %v424 = vunpack.c.l.b16 %v286
      %v425 = vunpack.c.l.b16 %v287
      %v426 = vunpack.c.l.b16 %v288
      %v427 = vunpack.c.l.b16 %v289
      %v428 = vunpack.c.l.b16 %v290
      %v429 = vunpack.c.l.b16 %v291
      %v430 = vunpack.c.l.b16 %v292
      %v431 = vunpack.c.l.b16 %v293
      %v432 = vunpack.c.l.b16 %v294
      %v433 = vunpack.c.l.b16 %v295
      %v434 = vunpack.c.l.b16 %v296
      %v435 = vunpack.c.l.b16 %v297
      %v436 = vunpack.c.l.b16 %v298
      %v437 = vunpack.c.l.b16 %v299
      %v438 = vunpack.c.l.b16 %v300
      %v439 = vunpack.c.l.b16 %v301
      %v440 = vpack.c.b16 %v425, %v424
      %v441 = vpack.c.b16 %v427, %v426
      %v442 = vpack.c.b16 %v429, %v428
      %v443 = vpack.c.b16 %v431, %v430
      %v444 = vpack.c.b16 %v433, %v432
      %v445 = vpack.c.b16 %v435, %v434
      %v446 = vpack.c.b16 %v437, %v436
      %v447 = vpack.c.b16 %v439, %v438
      %456 = vmatprep.subr.bf16.mxu0 0
      %457 = vmatpush1.bf16.msra.mxu0 %v447
      %458 = vmatprep.subr.bf16.mxu0 0
      %459 = vmatpush1.bf16.msra.mxu0 %v446
      %460 = vmatprep.subr.bf16.mxu0 0
      %461 = vmatpush1.bf16.msra.mxu0 %v445
      %462 = vmatprep.subr.bf16.mxu0 0
      %463 = vmatpush1.bf16.msra.mxu0 %v444
      %464 = vmatprep.subr.bf16.mxu0 0
      %465 = vmatpush1.bf16.msra.mxu0 %v443
      %466 = vmatprep.subr.bf16.mxu0 0
      %467 = vmatpush1.bf16.msra.mxu0 %v442
      %468 = vmatprep.subr.bf16.mxu0 0
      %469 = vmatpush1.bf16.msra.mxu0 %v441
      %470 = vmatprep.subr.bf16.mxu0 0
      %471 = vmatpush1.bf16.msra.mxu0 %v440
      %472 = vmatprep.subr.bf16.mxu0 0
      %473 = vmatpush2.bf16.msra.mxu0 0
      %474 = vmatprep.subr.bf16.mxu0 0
      %475 = vmatpush2.bf16.msra.mxu0 0
      %476 = vmatprep.subr.bf16.mxu0 0
      %477 = vmatpush2.bf16.msra.mxu0 0
      %478 = vmatprep.subr.bf16.mxu0 0
      %479 = vmatpush2.bf16.msra.mxu0 0
      %480 = vmatprep.subr.bf16.mxu0 0
      %481 = vmatpush2.bf16.msra.mxu0 0
      %482 = vmatprep.subr.bf16.mxu0 0
      %483 = vmatpush2.bf16.msra.mxu0 0
      %484 = vmatprep.subr.bf16.mxu0 0
      %485 = vmatpush2.bf16.msra.mxu0 0
      %486 = vmatprep.subr.bf16.mxu0 0
      %487 = vmatpush2.bf16.msra.mxu0 0
      %488 = vmatprep.mubr.bf16.mxu0 0
      %489 = vmatmul.mubr.bf16.gmra.mxu0 %v285
      %v490 = vpop.f32.mrf.mxu0
      %v491 = vadd.f32 %v403, %v490
      %v492 = vpop.f32.mrf.mxu0
      %v493 = vpop.f32.mrf.mxu0
      %v494 = vpop.f32.mrf.mxu0
      %495 = vdwg.mxu0
      %v496 = vpack.c.bf16 %v284, %v284
      %s497 = scalar_lea.vmem %s1, 128
      %v498 = vld [vmem:[%s497] sm:$0xf]
      %v499 = vld [vmem:[%s497 + $0x4] sm:$0xf]
      %v500 = vld [vmem:[%s497 + $0x8] sm:$0xf]
      %v501 = vld [vmem:[%s497 + $0xc] sm:$0xf]
      %v502 = vld [vmem:[%s497 + $0x10] sm:$0xf]
      %v503 = vld [vmem:[%s497 + $0x14] sm:$0xf]
      %v504 = vld [vmem:[%s497 + $0x18] sm:$0xf]
      %v505 = vld [vmem:[%s497 + $0x1c] sm:$0xf]
      %v506 = vld [vmem:[%s497 + $0x20] sm:$0xf]
      %v507 = vld [vmem:[%s497 + $0x24] sm:$0xf]
      %v508 = vld [vmem:[%s497 + $0x28] sm:$0xf]
      %v509 = vld [vmem:[%s497 + $0x2c] sm:$0xf]
      %v510 = vld [vmem:[%s497 + $0x30] sm:$0xf]
      %v511 = vld [vmem:[%s497 + $0x34] sm:$0xf]
      %v512 = vld [vmem:[%s497 + $0x38] sm:$0xf]
      %v513 = vld [vmem:[%s497 + $0x3c] sm:$0xf]
      %v530 = vunpack.c.l.b16 %v498
      %v531 = vunpack.c.l.b16 %v499
      %v532 = vunpack.c.l.b16 %v500
      %v533 = vunpack.c.l.b16 %v501
      %v534 = vunpack.c.l.b16 %v502
      %v535 = vunpack.c.l.b16 %v503
      %v536 = vunpack.c.l.b16 %v504
      %v537 = vunpack.c.l.b16 %v505
      %v538 = vunpack.c.l.b16 %v506
      %v539 = vunpack.c.l.b16 %v507
      %v540 = vunpack.c.l.b16 %v508
      %v541 = vunpack.c.l.b16 %v509
      %v542 = vunpack.c.l.b16 %v510
      %v543 = vunpack.c.l.b16 %v511
      %v544 = vunpack.c.l.b16 %v512
      %v545 = vunpack.c.l.b16 %v513
      %v546 = vpack.c.b16 %v531, %v530
      %v547 = vpack.c.b16 %v533, %v532
      %v548 = vpack.c.b16 %v535, %v534
      %v549 = vpack.c.b16 %v537, %v536
      %v550 = vpack.c.b16 %v539, %v538
      %v551 = vpack.c.b16 %v541, %v540
      %v552 = vpack.c.b16 %v543, %v542
      %v553 = vpack.c.b16 %v545, %v544
      %562 = vmatprep.subr.bf16.mxu0 0
      %563 = vmatpush1.bf16.msra.mxu0 %v553
      %564 = vmatprep.subr.bf16.mxu0 0
      %565 = vmatpush1.bf16.msra.mxu0 %v552
      %566 = vmatprep.subr.bf16.mxu0 0
      %567 = vmatpush1.bf16.msra.mxu0 %v551
      %568 = vmatprep.subr.bf16.mxu0 0
      %569 = vmatpush1.bf16.msra.mxu0 %v550
      %570 = vmatprep.subr.bf16.mxu0 0
      %571 = vmatpush1.bf16.msra.mxu0 %v549
      %572 = vmatprep.subr.bf16.mxu0 0
      %573 = vmatpush1.bf16.msra.mxu0 %v548
      %574 = vmatprep.subr.bf16.mxu0 0
      %575 = vmatpush1.bf16.msra.mxu0 %v547
      %576 = vmatprep.subr.bf16.mxu0 0
      %577 = vmatpush1.bf16.msra.mxu0 %v546
      %578 = vmatprep.subr.bf16.mxu0 0
      %579 = vmatpush2.bf16.msra.mxu0 0
      %580 = vmatprep.subr.bf16.mxu0 0
      %581 = vmatpush2.bf16.msra.mxu0 0
      %582 = vmatprep.subr.bf16.mxu0 0
      %583 = vmatpush2.bf16.msra.mxu0 0
      %584 = vmatprep.subr.bf16.mxu0 0
      %585 = vmatpush2.bf16.msra.mxu0 0
      %586 = vmatprep.subr.bf16.mxu0 0
      %587 = vmatpush2.bf16.msra.mxu0 0
      %588 = vmatprep.subr.bf16.mxu0 0
      %589 = vmatpush2.bf16.msra.mxu0 0
      %590 = vmatprep.subr.bf16.mxu0 0
      %591 = vmatpush2.bf16.msra.mxu0 0
      %592 = vmatprep.subr.bf16.mxu0 0
      %593 = vmatpush2.bf16.msra.mxu0 0
      %594 = vmatprep.mubr.bf16.mxu0 0
      %595 = vmatmul.mubr.bf16.gmra.mxu0 %v496
      %v596 = vpop.f32.mrf.mxu0
      %v597 = vadd.f32 0.0, %v596
      %v598 = vpop.f32.mrf.mxu0
      %v599 = vpop.f32.mrf.mxu0
      %v600 = vpop.f32.mrf.mxu0
      %601 = vdwg.mxu0
      %v602 = vadd.f32 %v491, %v597
      %v603 = vld [vmem:[%s2] sm:$0x1]
      %v605 = vlaneseq
      %v606 = vshrl.u32 %v605, 7
      %v607 = vsub.s32 0, %v606
      %v608 = vrot.slane %v603, %v607
      %v610 = vadd.f32 %v602, %v608
      %vm611 = vcmp.ge.f32.partialorder %v610, 0.0
      %v612 = vmul.f32 %v610, 0.01
      %v613 = vsel %vm611, %v610, %v612
      %614 = vst [vmem:[%s253] sm:$0xf] %v613
      %vm615 = vcmask 1043456
      %v616 = vsel %vm615, %v613, 0.0
      %v617 = vrot.slane %v616, 4
      %v618 = vadd.f32 %v616, %v617
      %v619 = vrot.slane %v618, 2
      %v620 = vadd.f32 %v618, %v619
      %v621 = vrot.slane %v620, 1
      %v622 = vadd.f32 %v620, %v621
      %623 = vst [vmem:[%s257] sm:$0x1] %v622
      %v624 = vmul.f32 %v613, %v613
      %v625 = vsel %vm615, %v624, 0.0
      %v626 = vrot.slane %v625, 4
      %v627 = vadd.f32 %v625, %v626
      %v628 = vrot.slane %v627, 2
      %v629 = vadd.f32 %v627, %v628
      %v630 = vrot.slane %v629, 1
      %v631 = vadd.f32 %v629, %v630
      %632 = vst [vmem:[%s257 + $0x1] sm:$0x1] %v631
      %p633 = scmp.lt.s32.totalorder %s18, 1
      %s634 = scalar_select %p633, %s18, 1
      %s635 = smul.addr %s634, 4
      %s636 = scalar_lea.vmem %s5, %s635
      %p637 = scmp.lt.s32.totalorder %s18, 1
      %s638 = scalar_select %p637, %s18, 1
      %s639 = smul.addr %s638, 2
      %s640 = scalar_lea.vmem %s6, %s639
      // Predicated region
      $region41: #{dblock_forward.4} parent=39 // pred_check
        %p641 = pneg %p146
      $region42: #{dblock_forward.4} parent=39 // pred_check_branch
        %643 = sbr.rel (%p641) target = $region44
      $region43: #{dblock_forward.4} parent=39 // pred_region
        _
      $region44: #{dblock_forward.4} parent=39 // pred_fallthru
        _
      // Predicated region
      $region45: #{dblock_forward.4} parent=39 // pred_check
        %p644 = pneg %p172
      $region46: #{dblock_forward.4} parent=39 // pred_check_branch
        %646 = sbr.rel (%p644) target = $region48
      $region47: #{dblock_forward.4} parent=39 // pred_region
        _
      $region48: #{dblock_forward.4} parent=39 // pred_fallthru
        _
    $region40: #{dblock_forward.4} parent=5 // pred_fallthru
      _
    %p647 = scmp.le.s32.totalorder 2, %s13
    // Predicated region
    $region49: #{dblock_forward.4} parent=5 // pred_check
      %p648 = pneg %p647
    $region50: #{dblock_forward.4} parent=5 // pred_check_branch
      %650 = sbr.rel (%p648) target = $region52
    $region51: #{dblock_forward.4} parent=5 // pred_region
      %s651 = ssub.s32 %s13, 2
      // Predicated region
      $region53: #{dblock_forward.4} parent=51 // pred_check
        %p652 = pneg %p152
      $region54: #{dblock_forward.4} parent=51 // pred_check_branch
        %654 = sbr.rel (%p652) target = $region56
      $region55: #{dblock_forward.4} parent=51 // pred_region
        %p655 = scmp.lt.s32.totalorder %s19, 1
        %s656 = scalar_select %p655, %s19, 1
        %s657 = smul.addr %s656, 4
        %s658 = scalar_lea.vmem %s5, %s657
      $region56: #{dblock_forward.4} parent=51 // pred_fallthru
        _
      // Predicated region
      $region57: #{dblock_forward.4} parent=51 // pred_check
        %p659 = pneg %p178
      $region58: #{dblock_forward.4} parent=51 // pred_check_branch
        %661 = sbr.rel (%p659) target = $region60
      $region59: #{dblock_forward.4} parent=51 // pred_region
        %p662 = scmp.lt.s32.totalorder %s19, 1
        %s663 = scalar_select %p662, %s19, 1
        %s664 = smul.addr %s663, 2
        %s665 = scalar_lea.vmem %s6, %s664
      $region60: #{dblock_forward.4} parent=51 // pred_fallthru
        _
    $region52: #{dblock_forward.4} parent=5 // pred_fallthru
      _
  $region6: #{dblock_forward.4} parent=0 // loop_footer
    %s17 = sadd.s32 1, %s13
  $region7: #{dblock_forward.4} parent=0 // loop_footer_branch
    %12 = sbr.rel target = $region3
  $region8: #{dblock_forward.4} parent=0 // loop_exit
    _

</llo_original>
